<compile_context>
chip_gen: v7x
topology: tpu7x:2x2x1
jax: 0.10.0
libtpu: 0.0.40
codegen_flags: <defaults>
</compile_context>

<pallas_src>
import jax
import jax.numpy as jnp
from jax.experimental import pallas as pl
from jax.experimental.pallas import tpu as pltpu
import numpy as np


def _decoder_kernel(emb_ref, s_ref, enc_ref, sel_ref, selt_ref,        # data
                    was_ref, wae_ref, v_ref,                           # attention
                    wer_ref, wcr_ref, whr_ref, br_ref,                 # GRU r gate
                    wez_ref, wcz_ref, whz_ref, bz_ref,                 # GRU z gate
                    wen_ref, wcn_ref, whn_ref, bin_ref, bhn_ref,       # GRU n gate
                    wfh_ref, wfcc_ref, wfe_ref, bfc_ref,               # fc_out
                    pred_ref, h_ref):                                  # outputs
    f32 = jnp.float32

    emb = emb_ref[...]        # [B, E]
    s = s_ref[...]            # [B, D]   previous decoder hidden state
    enc = enc_ref[...]        # [L*B, 2H] time-major flattened encoder output
    sel = sel_ref[...]        # [L*B, B]  one-hot: row t*B+b -> batch b
    selt = selt_ref[...]      # [B, L*B]

    def mm(a, w):
        return jnp.dot(a, w, preferred_element_type=f32)

    # ---------------- attention (Bahdanau): a = softmax_t(v . tanh(W[s; enc_t]))
    e_s = mm(s, was_ref[...])                       # [B, D]
    e_enc = mm(enc, wae_ref[...])                   # [L*B, D]
    energy = jnp.tanh(e_enc + mm(sel, e_s))         # [L*B, D]  (Sel broadcasts e_s per batch row)
    scores = mm(energy, v_ref[...])                 # [L*B, 1]

    # softmax over the time axis, per batch element (grouped rows t*B + b).
    # Subtracting the global max is valid (softmax shift invariance) and
    # avoids a segmented max.
    m = jnp.max(scores, axis=0, keepdims=True)      # [1, 1]
    p = jnp.exp(scores - m)                         # [L*B, 1] unnormalized weights
    denom = mm(selt, p)                             # [B, 1]   per-batch sum over time

    # context c[b] = (1/denom[b]) * sum_t p[t,b] * enc[t,b,:]
    # (softmax normalization folded into the segmented reduction)
    c = mm(selt, p * enc) / denom                   # [B, 2H]

    # ---------------- single-step GRU cell (PyTorch gate order r, z, n)
    r = jax.nn.sigmoid(mm(emb, wer_ref[...]) + mm(c, wcr_ref[...])
                       + mm(s, whr_ref[...]) + br_ref[...])
    z = jax.nn.sigmoid(mm(emb, wez_ref[...]) + mm(c, wcz_ref[...])
                       + mm(s, whz_ref[...]) + bz_ref[...])
    gh_n = mm(s, whn_ref[...]) + bhn_ref[...]
    n = jnp.tanh(mm(emb, wen_ref[...]) + mm(c, wcn_ref[...]) + bin_ref[...] + r * gh_n)
    h = (1.0 - z) * n + z * s                       # [B, D]  (dec_output == dec_hidden)

    # ---------------- fc_out on concat(dec_output, c, embedded), as split matmuls
    pred = (mm(h, wfh_ref[...]) + mm(c, wfcc_ref[...])
            + mm(emb, wfe_ref[...]) + bfc_ref[...])  # [B, V]

    pred_ref[...] = pred
    h_ref[...] = h


def decoder_pallas(dec_input, s, enc_output, params):
    """dec_input: int32 [B]; s: [B, D]; enc_output: [L, B, 2H].
    Returns (pred [B, V], dec_hidden [B, D])."""
    # Embedding lookup (gather) in plain JAX; dropout is identity at eval.
    # TODO(synk): dropout is treated as eval-mode identity (no RNG mask in kernel).
    emb = params["embedding"][dec_input].astype(jnp.float32)       # [B, E]

    L, B, K2 = enc_output.shape                                    # K2 = 2 * enc_hid
    E = emb.shape[1]
    D = s.shape[1]
    V = params["fc_W"].shape[0]

    enc_flat = enc_output.reshape(L * B, K2).astype(jnp.float32)   # row t*B + b
    sel = jax.nn.one_hot(jnp.arange(L * B) % B, B, dtype=jnp.float32)  # [L*B, B]
    selt = sel.T                                                   # [B, L*B]

    # attention Linear(dec_hid + 2*enc_hid -> dec_hid, bias=False): cols [s | enc]
    aw = params["attn_W"]                                          # [D, D + 2H]
    was = aw[:, :D].T                                              # [D, D]
    wae = aw[:, D:].T                                              # [2H, D]
    vcol = params["attn_v"].T                                      # [D, 1]

    # GRU(emb + 2H -> D), gate rows ordered [r; z; n], input cols [emb | c]
    wih, whh = params["gru_wih"], params["gru_whh"]
    bih, bhh = params["gru_bih"], params["gru_bhh"]
    w_r, w_z, w_n = wih[:D], wih[D:2 * D], wih[2 * D:]
    wer, wcr = w_r[:, :E].T, w_r[:, E:].T
    wez, wcz = w_z[:, :E].T, w_z[:, E:].T
    wen, wcn = w_n[:, :E].T, w_n[:, E:].T
    whr, whz, whn = whh[:D].T, whh[D:2 * D].T, whh[2 * D:].T
    br = (bih[:D] + bhh[:D]).reshape(1, D)          # pre-folded r bias
    bz = (bih[D:2 * D] + bhh[D:2 * D]).reshape(1, D)
    bin_ = bih[2 * D:].reshape(1, D)                # n-gate biases kept separate (r * (...))
    bhn = bhh[2 * D:].reshape(1, D)

    # fc_out Linear(D + 2H + E -> V): cols [dec_output | c | emb]
    fw = params["fc_W"]
    wfh = fw[:, :D].T                                              # [D, V]
    wfcc = fw[:, D:D + K2].T                                       # [2H, V]
    wfe = fw[:, D + K2:].T                                         # [E, V]
    bfc = params["fc_b"].reshape(1, V)

    vmem = pl.BlockSpec(memory_space=pltpu.MemorySpace.VMEM)

    pred, h = pl.pallas_call(
        _decoder_kernel,
        out_shape=(
            jax.ShapeDtypeStruct((B, V), jnp.float32),
            jax.ShapeDtypeStruct((B, D), jnp.float32),
        ),
        in_specs=[vmem] * 25,
        out_specs=(vmem, vmem),
    )(
        emb, s, enc_flat, sel, selt,
        was, wae, vcol,
        wer, wcr, whr, br,
        wez, wcz, whz, bz,
        wen, wcn, whn, bin_, bhn,
        wfh, wfcc, wfe, bfc,
    )
    return pred, h


# ----------------------------- pure-JAX reference -----------------------------
def decoder_ref(dec_input, s, enc_output, params):
    """Mirrors the PyTorch Decoder.forward (with the standard Bahdanau attention)."""
    emb = params["embedding"][dec_input].astype(jnp.float32)       # [B, E]
    L, B, _ = enc_output.shape
    D = s.shape[1]

    # attention
    s_rep = jnp.repeat(s[:, None, :], L, axis=1)                   # [B, L, D]
    enc_bm = jnp.transpose(enc_output, (1, 0, 2))                  # [B, L, 2H]
    energy = jnp.tanh(jnp.concatenate([s_rep, enc_bm], axis=2) @ params["attn_W"].T)
    att = (energy @ params["attn_v"].T)[..., 0]                    # [B, L]
    a = jax.nn.softmax(att, axis=1)
    c = jnp.einsum("bl,blk->bk", a, enc_bm)                        # [B, 2H]

    # single-step GRU
    x = jnp.concatenate([emb, c], axis=1)
    gi = x @ params["gru_wih"].T + params["gru_bih"]
    gh = s @ params["gru_whh"].T + params["gru_bhh"]
    r = jax.nn.sigmoid(gi[:, :D] + gh[:, :D])
    z = jax.nn.sigmoid(gi[:, D:2 * D] + gh[:, D:2 * D])
    n = jnp.tanh(gi[:, 2 * D:] + r * gh[:, 2 * D:])
    h = (1.0 - z) * n + z * s

    pred = jnp.concatenate([h, c, emb], axis=1) @ params["fc_W"].T + params["fc_b"]
    return pred, h


# --------------------------------- main ---------------------------------------
def make_params(key, output_dim, emb_dim, enc_hid_dim, dec_hid_dim):
    ks = jax.random.split(key, 9)
    scale = 0.1
    D, E, H, V = dec_hid_dim, emb_dim, enc_hid_dim, output_dim
    return {
        "embedding": scale * jax.random.normal(ks[0], (V, E), jnp.float32),
        # attention: Linear(2H + D -> D, bias=False), columns ordered [s | enc]
        "attn_W": scale * jax.random.normal(ks[1], (D, D + 2 * H), jnp.float32),
        "attn_v": scale * jax.random.normal(ks[2], (1, D), jnp.float32),
        # GRU(2H + E -> D), PyTorch layout [3D, in], gate rows [r; z; n], cols [emb | c]
        "gru_wih": scale * jax.random.normal(ks[3], (3 * D, E + 2 * H), jnp.float32),
        "gru_whh": scale * jax.random.normal(ks[4], (3 * D, D), jnp.float32),
        "gru_bih": scale * jax.random.normal(ks[5], (3 * D,), jnp.float32),
        "gru_bhh": scale * jax.random.normal(ks[6], (3 * D,), jnp.float32),
        # fc_out: Linear(D + 2H + E -> V), columns [dec_output | c | emb]
        "fc_W": scale * jax.random.normal(ks[7], (V, D + 2 * H + E), jnp.float32),
        "fc_b": scale * jax.random.normal(ks[8], (V,), jnp.float32),
    }


if __name__ == "__main__":
    output_dim = 50       # target vocab size
    emb_dim = 32
    enc_hid_dim = 32
    dec_hid_dim = 32
    src_len = 8
    batch = 2

    key = jax.random.PRNGKey(0)
    kp, k1, k2, k3 = jax.random.split(key, 4)
    params = make_params(kp, output_dim, emb_dim, enc_hid_dim, dec_hid_dim)

    dec_input = jax.random.randint(k1, (batch,), 0, output_dim, dtype=jnp.int32)
    s = 0.1 * jax.random.normal(k2, (batch, dec_hid_dim), jnp.float32)
    enc_output = 0.1 * jax.random.normal(k3, (src_len, batch, 2 * enc_hid_dim), jnp.float32)

    pred, dec_hidden = jax.jit(decoder_pallas)(dec_input, s, enc_output, params)
    pred = jax.block_until_ready(pred)
    dec_hidden = jax.block_until_ready(dec_hidden)

    pred_ref, hid_ref = decoder_ref(dec_input, s, enc_output, params)

    assert pred.shape == (batch, output_dim)
    assert dec_hidden.shape == (batch, dec_hid_dim)
    np.testing.assert_allclose(np.asarray(pred), np.asarray(pred_ref), atol=1e-4, rtol=1e-4)
    np.testing.assert_allclose(np.asarray(dec_hidden), np.asarray(hid_ref), atol=1e-4, rtol=1e-4)

    print("KERNEL_OK")
</pallas_src>

<mosaic_0001>
module attributes {stable_mosaic.version = 11 : i64} {
  func.func @_decoder_kernel(%arg0: memref<2x32xf32, #tpu.memory_space<vmem>>, %arg1: memref<2x32xf32, #tpu.memory_space<vmem>>, %arg2: memref<16x64xf32, #tpu.memory_space<vmem>>, %arg3: memref<16x2xf32, #tpu.memory_space<vmem>>, %arg4: memref<2x16xf32, #tpu.memory_space<vmem>>, %arg5: memref<32x32xf32, #tpu.memory_space<vmem>>, %arg6: memref<64x32xf32, #tpu.memory_space<vmem>>, %arg7: memref<32x1xf32, #tpu.memory_space<vmem>>, %arg8: memref<32x32xf32, #tpu.memory_space<vmem>>, %arg9: memref<64x32xf32, #tpu.memory_space<vmem>>, %arg10: memref<32x32xf32, #tpu.memory_space<vmem>>, %arg11: memref<1x32xf32, #tpu.memory_space<vmem>>, %arg12: memref<32x32xf32, #tpu.memory_space<vmem>>, %arg13: memref<64x32xf32, #tpu.memory_space<vmem>>, %arg14: memref<32x32xf32, #tpu.memory_space<vmem>>, %arg15: memref<1x32xf32, #tpu.memory_space<vmem>>, %arg16: memref<32x32xf32, #tpu.memory_space<vmem>>, %arg17: memref<64x32xf32, #tpu.memory_space<vmem>>, %arg18: memref<32x32xf32, #tpu.memory_space<vmem>>, %arg19: memref<1x32xf32, #tpu.memory_space<vmem>>, %arg20: memref<1x32xf32, #tpu.memory_space<vmem>>, %arg21: memref<32x50xf32, #tpu.memory_space<vmem>>, %arg22: memref<64x50xf32, #tpu.memory_space<vmem>>, %arg23: memref<32x50xf32, #tpu.memory_space<vmem>>, %arg24: memref<1x50xf32, #tpu.memory_space<vmem>>, %arg25: memref<2x50xf32, #tpu.memory_space<vmem>>, %arg26: memref<2x32xf32, #tpu.memory_space<vmem>>) attributes {dimension_semantics = [], scalar_prefetch = 0 : i64, scratch_operands = 0 : i64, tpu.core_type = #tpu.core_type<tc>} {
    %c0 = arith.constant 0 : index
    %c0_0 = arith.constant 0 : index
    %0 = vector.load %arg0[%c0, %c0_0] : memref<2x32xf32, #tpu.memory_space<vmem>>, vector<2x32xf32>
    %c0_1 = arith.constant 0 : index
    %c0_2 = arith.constant 0 : index
    %1 = vector.load %arg1[%c0_1, %c0_2] : memref<2x32xf32, #tpu.memory_space<vmem>>, vector<2x32xf32>
    %c0_3 = arith.constant 0 : index
    %c0_4 = arith.constant 0 : index
    %2 = vector.load %arg2[%c0_3, %c0_4] : memref<16x64xf32, #tpu.memory_space<vmem>>, vector<16x64xf32>
    %c0_5 = arith.constant 0 : index
    %c0_6 = arith.constant 0 : index
    %3 = vector.load %arg3[%c0_5, %c0_6] : memref<16x2xf32, #tpu.memory_space<vmem>>, vector<16x2xf32>
    %c0_7 = arith.constant 0 : index
    %c0_8 = arith.constant 0 : index
    %4 = vector.load %arg4[%c0_7, %c0_8] : memref<2x16xf32, #tpu.memory_space<vmem>>, vector<2x16xf32>
    %c0_9 = arith.constant 0 : index
    %c0_10 = arith.constant 0 : index
    %5 = vector.load %arg5[%c0_9, %c0_10] : memref<32x32xf32, #tpu.memory_space<vmem>>, vector<32x32xf32>
    %cst = arith.constant dense<0.000000e+00> : vector<2x32xf32>
    %6 = tpu.matmul %1, %5, %cst {dimension_numbers = #tpu.dot_dimension_numbers<[1], [0], [0], [1], [0, 0, 1, 1], [], []>} : vector<2x32xf32>, vector<32x32xf32>, vector<2x32xf32> -> vector<2x32xf32>
    %c0_11 = arith.constant 0 : index
    %c0_12 = arith.constant 0 : index
    %7 = vector.load %arg6[%c0_11, %c0_12] : memref<64x32xf32, #tpu.memory_space<vmem>>, vector<64x32xf32>
    %cst_13 = arith.constant dense<0.000000e+00> : vector<16x32xf32>
    %8 = tpu.matmul %2, %7, %cst_13 {dimension_numbers = #tpu.dot_dimension_numbers<[1], [0], [0], [1], [0, 0, 1, 1], [], []>} : vector<16x64xf32>, vector<64x32xf32>, vector<16x32xf32> -> vector<16x32xf32>
    %cst_14 = arith.constant dense<0.000000e+00> : vector<16x32xf32>
    %9 = tpu.matmul %3, %6, %cst_14 {dimension_numbers = #tpu.dot_dimension_numbers<[1], [0], [0], [1], [0, 0, 1, 1], [], []>} : vector<16x2xf32>, vector<2x32xf32>, vector<16x32xf32> -> vector<16x32xf32>
    %10 = arith.addf %8, %9 : vector<16x32xf32>
    %11 = math.tanh %10 : vector<16x32xf32>
    %c0_15 = arith.constant 0 : index
    %c0_16 = arith.constant 0 : index
    %12 = vector.load %arg7[%c0_15, %c0_16] : memref<32x1xf32, #tpu.memory_space<vmem>>, vector<32x1xf32>
    %cst_17 = arith.constant dense<0.000000e+00> : vector<16x1xf32>
    %13 = tpu.matmul %11, %12, %cst_17 {dimension_numbers = #tpu.dot_dimension_numbers<[1], [0], [0], [1], [0, 0, 1, 1], [], []>} : vector<16x32xf32>, vector<32x1xf32>, vector<16x1xf32> -> vector<16x1xf32>
    %cst_18 = arith.constant dense<0xFF800000> : vector<1xf32>
    %14 = vector.multi_reduction <maximumf>, %13, %cst_18 [0] : vector<16x1xf32> to vector<1xf32>
    %15 = vector.shape_cast %14 : vector<1xf32> to vector<1x1xf32>
    %16 = vector.broadcast %15 : vector<1x1xf32> to vector<16x1xf32>
    %17 = arith.subf %13, %16 : vector<16x1xf32>
    %18 = math.exp %17 : vector<16x1xf32>
    %cst_19 = arith.constant dense<0.000000e+00> : vector<2x1xf32>
    %19 = tpu.matmul %4, %18, %cst_19 {dimension_numbers = #tpu.dot_dimension_numbers<[1], [0], [0], [1], [0, 0, 1, 1], [], []>} : vector<2x16xf32>, vector<16x1xf32>, vector<2x1xf32> -> vector<2x1xf32>
    %20 = vector.broadcast %18 : vector<16x1xf32> to vector<16x64xf32>
    %21 = arith.mulf %20, %2 : vector<16x64xf32>
    %cst_20 = arith.constant dense<0.000000e+00> : vector<2x64xf32>
    %22 = tpu.matmul %4, %21, %cst_20 {dimension_numbers = #tpu.dot_dimension_numbers<[1], [0], [0], [1], [0, 0, 1, 1], [], []>} : vector<2x16xf32>, vector<16x64xf32>, vector<2x64xf32> -> vector<2x64xf32>
    %23 = vector.broadcast %19 : vector<2x1xf32> to vector<2x64xf32>
    %24 = arith.divf %22, %23 : vector<2x64xf32>
    %c0_21 = arith.constant 0 : index
    %c0_22 = arith.constant 0 : index
    %25 = vector.load %arg8[%c0_21, %c0_22] : memref<32x32xf32, #tpu.memory_space<vmem>>, vector<32x32xf32>
    %cst_23 = arith.constant dense<0.000000e+00> : vector<2x32xf32>
    %26 = tpu.matmul %0, %25, %cst_23 {dimension_numbers = #tpu.dot_dimension_numbers<[1], [0], [0], [1], [0, 0, 1, 1], [], []>} : vector<2x32xf32>, vector<32x32xf32>, vector<2x32xf32> -> vector<2x32xf32>
    %c0_24 = arith.constant 0 : index
    %c0_25 = arith.constant 0 : index
    %27 = vector.load %arg9[%c0_24, %c0_25] : memref<64x32xf32, #tpu.memory_space<vmem>>, vector<64x32xf32>
    %cst_26 = arith.constant dense<0.000000e+00> : vector<2x32xf32>
    %28 = tpu.matmul %24, %27, %cst_26 {dimension_numbers = #tpu.dot_dimension_numbers<[1], [0], [0], [1], [0, 0, 1, 1], [], []>} : vector<2x64xf32>, vector<64x32xf32>, vector<2x32xf32> -> vector<2x32xf32>
    %29 = arith.addf %26, %28 : vector<2x32xf32>
    %c0_27 = arith.constant 0 : index
    %c0_28 = arith.constant 0 : index
    %30 = vector.load %arg10[%c0_27, %c0_28] : memref<32x32xf32, #tpu.memory_space<vmem>>, vector<32x32xf32>
    %cst_29 = arith.constant dense<0.000000e+00> : vector<2x32xf32>
    %31 = tpu.matmul %1, %30, %cst_29 {dimension_numbers = #tpu.dot_dimension_numbers<[1], [0], [0], [1], [0, 0, 1, 1], [], []>} : vector<2x32xf32>, vector<32x32xf32>, vector<2x32xf32> -> vector<2x32xf32>
    %32 = arith.addf %29, %31 : vector<2x32xf32>
    %c0_30 = arith.constant 0 : index
    %c0_31 = arith.constant 0 : index
    %33 = vector.load %arg11[%c0_30, %c0_31] : memref<1x32xf32, #tpu.memory_space<vmem>>, vector<1x32xf32>
    %34 = vector.broadcast %33 : vector<1x32xf32> to vector<2x32xf32>
    %35 = arith.addf %32, %34 : vector<2x32xf32>
    %36 = arith.negf %35 : vector<2x32xf32>
    %37 = math.exp %36 : vector<2x32xf32>
    %cst_32 = arith.constant 1.000000e+00 : f32
    %38 = vector.broadcast %cst_32 : f32 to vector<2x32xf32>
    %39 = arith.addf %38, %37 : vector<2x32xf32>
    %40 = arith.divf %38, %39 : vector<2x32xf32>
    %c0_33 = arith.constant 0 : index
    %c0_34 = arith.constant 0 : index
    %41 = vector.load %arg12[%c0_33, %c0_34] : memref<32x32xf32, #tpu.memory_space<vmem>>, vector<32x32xf32>
    %cst_35 = arith.constant dense<0.000000e+00> : vector<2x32xf32>
    %42 = tpu.matmul %0, %41, %cst_35 {dimension_numbers = #tpu.dot_dimension_numbers<[1], [0], [0], [1], [0, 0, 1, 1], [], []>} : vector<2x32xf32>, vector<32x32xf32>, vector<2x32xf32> -> vector<2x32xf32>
    %c0_36 = arith.constant 0 : index
    %c0_37 = arith.constant 0 : index
    %43 = vector.load %arg13[%c0_36, %c0_37] : memref<64x32xf32, #tpu.memory_space<vmem>>, vector<64x32xf32>
    %cst_38 = arith.constant dense<0.000000e+00> : vector<2x32xf32>
    %44 = tpu.matmul %24, %43, %cst_38 {dimension_numbers = #tpu.dot_dimension_numbers<[1], [0], [0], [1], [0, 0, 1, 1], [], []>} : vector<2x64xf32>, vector<64x32xf32>, vector<2x32xf32> -> vector<2x32xf32>
    %45 = arith.addf %42, %44 : vector<2x32xf32>
    %c0_39 = arith.constant 0 : index
    %c0_40 = arith.constant 0 : index
    %46 = vector.load %arg14[%c0_39, %c0_40] : memref<32x32xf32, #tpu.memory_space<vmem>>, vector<32x32xf32>
    %cst_41 = arith.constant dense<0.000000e+00> : vector<2x32xf32>
    %47 = tpu.matmul %1, %46, %cst_41 {dimension_numbers = #tpu.dot_dimension_numbers<[1], [0], [0], [1], [0, 0, 1, 1], [], []>} : vector<2x32xf32>, vector<32x32xf32>, vector<2x32xf32> -> vector<2x32xf32>
    %48 = arith.addf %45, %47 : vector<2x32xf32>
    %c0_42 = arith.constant 0 : index
    %c0_43 = arith.constant 0 : index
    %49 = vector.load %arg15[%c0_42, %c0_43] : memref<1x32xf32, #tpu.memory_space<vmem>>, vector<1x32xf32>
    %50 = vector.broadcast %49 : vector<1x32xf32> to vector<2x32xf32>
    %51 = arith.addf %48, %50 : vector<2x32xf32>
    %52 = arith.negf %51 : vector<2x32xf32>
    %53 = math.exp %52 : vector<2x32xf32>
    %cst_44 = arith.constant 1.000000e+00 : f32
    %54 = vector.broadcast %cst_44 : f32 to vector<2x32xf32>
    %55 = arith.addf %54, %53 : vector<2x32xf32>
    %56 = arith.divf %54, %55 : vector<2x32xf32>
    %c0_45 = arith.constant 0 : index
    %c0_46 = arith.constant 0 : index
    %57 = vector.load %arg18[%c0_45, %c0_46] : memref<32x32xf32, #tpu.memory_space<vmem>>, vector<32x32xf32>
    %cst_47 = arith.constant dense<0.000000e+00> : vector<2x32xf32>
    %58 = tpu.matmul %1, %57, %cst_47 {dimension_numbers = #tpu.dot_dimension_numbers<[1], [0], [0], [1], [0, 0, 1, 1], [], []>} : vector<2x32xf32>, vector<32x32xf32>, vector<2x32xf32> -> vector<2x32xf32>
    %c0_48 = arith.constant 0 : index
    %c0_49 = arith.constant 0 : index
    %59 = vector.load %arg20[%c0_48, %c0_49] : memref<1x32xf32, #tpu.memory_space<vmem>>, vector<1x32xf32>
    %60 = vector.broadcast %59 : vector<1x32xf32> to vector<2x32xf32>
    %61 = arith.addf %58, %60 : vector<2x32xf32>
    %c0_50 = arith.constant 0 : index
    %c0_51 = arith.constant 0 : index
    %62 = vector.load %arg16[%c0_50, %c0_51] : memref<32x32xf32, #tpu.memory_space<vmem>>, vector<32x32xf32>
    %cst_52 = arith.constant dense<0.000000e+00> : vector<2x32xf32>
    %63 = tpu.matmul %0, %62, %cst_52 {dimension_numbers = #tpu.dot_dimension_numbers<[1], [0], [0], [1], [0, 0, 1, 1], [], []>} : vector<2x32xf32>, vector<32x32xf32>, vector<2x32xf32> -> vector<2x32xf32>
    %c0_53 = arith.constant 0 : index
    %c0_54 = arith.constant 0 : index
    %64 = vector.load %arg17[%c0_53, %c0_54] : memref<64x32xf32, #tpu.memory_space<vmem>>, vector<64x32xf32>
    %cst_55 = arith.constant dense<0.000000e+00> : vector<2x32xf32>
    %65 = tpu.matmul %24, %64, %cst_55 {dimension_numbers = #tpu.dot_dimension_numbers<[1], [0], [0], [1], [0, 0, 1, 1], [], []>} : vector<2x64xf32>, vector<64x32xf32>, vector<2x32xf32> -> vector<2x32xf32>
    %66 = arith.addf %63, %65 : vector<2x32xf32>
    %c0_56 = arith.constant 0 : index
    %c0_57 = arith.constant 0 : index
    %67 = vector.load %arg19[%c0_56, %c0_57] : memref<1x32xf32, #tpu.memory_space<vmem>>, vector<1x32xf32>
    %68 = vector.broadcast %67 : vector<1x32xf32> to vector<2x32xf32>
    %69 = arith.addf %66, %68 : vector<2x32xf32>
    %70 = arith.mulf %40, %61 : vector<2x32xf32>
    %71 = arith.addf %69, %70 : vector<2x32xf32>
    %72 = math.tanh %71 : vector<2x32xf32>
    %cst_58 = arith.constant 1.000000e+00 : f32
    %73 = vector.broadcast %cst_58 : f32 to vector<2x32xf32>
    %74 = arith.subf %73, %56 : vector<2x32xf32>
    %75 = arith.mulf %74, %72 : vector<2x32xf32>
    %76 = arith.mulf %56, %1 : vector<2x32xf32>
    %77 = arith.addf %75, %76 : vector<2x32xf32>
    %c0_59 = arith.constant 0 : index
    %c0_60 = arith.constant 0 : index
    %78 = vector.load %arg21[%c0_59, %c0_60] : memref<32x50xf32, #tpu.memory_space<vmem>>, vector<32x50xf32>
    %cst_61 = arith.constant dense<0.000000e+00> : vector<2x50xf32>
    %79 = tpu.matmul %77, %78, %cst_61 {dimension_numbers = #tpu.dot_dimension_numbers<[1], [0], [0], [1], [0, 0, 1, 1], [], []>} : vector<2x32xf32>, vector<32x50xf32>, vector<2x50xf32> -> vector<2x50xf32>
    %c0_62 = arith.constant 0 : index
    %c0_63 = arith.constant 0 : index
    %80 = vector.load %arg22[%c0_62, %c0_63] : memref<64x50xf32, #tpu.memory_space<vmem>>, vector<64x50xf32>
    %cst_64 = arith.constant dense<0.000000e+00> : vector<2x50xf32>
    %81 = tpu.matmul %24, %80, %cst_64 {dimension_numbers = #tpu.dot_dimension_numbers<[1], [0], [0], [1], [0, 0, 1, 1], [], []>} : vector<2x64xf32>, vector<64x50xf32>, vector<2x50xf32> -> vector<2x50xf32>
    %82 = arith.addf %79, %81 : vector<2x50xf32>
    %c0_65 = arith.constant 0 : index
    %c0_66 = arith.constant 0 : index
    %83 = vector.load %arg23[%c0_65, %c0_66] : memref<32x50xf32, #tpu.memory_space<vmem>>, vector<32x50xf32>
    %cst_67 = arith.constant dense<0.000000e+00> : vector<2x50xf32>
    %84 = tpu.matmul %0, %83, %cst_67 {dimension_numbers = #tpu.dot_dimension_numbers<[1], [0], [0], [1], [0, 0, 1, 1], [], []>} : vector<2x32xf32>, vector<32x50xf32>, vector<2x50xf32> -> vector<2x50xf32>
    %85 = arith.addf %82, %84 : vector<2x50xf32>
    %c0_68 = arith.constant 0 : index
    %c0_69 = arith.constant 0 : index
    %86 = vector.load %arg24[%c0_68, %c0_69] : memref<1x50xf32, #tpu.memory_space<vmem>>, vector<1x50xf32>
    %87 = vector.broadcast %86 : vector<1x50xf32> to vector<2x50xf32>
    %88 = arith.addf %85, %87 : vector<2x50xf32>
    %c0_70 = arith.constant 0 : index
    %c0_71 = arith.constant 0 : index
    %89 = vector.load %arg25[%c0_70, %c0_71] : memref<2x50xf32, #tpu.memory_space<vmem>>, vector<2x50xf32>
    tpu.vector_store %arg25[%c0_70, %c0_71], %88 {strides = array<i32>} : memref<2x50xf32, #tpu.memory_space<vmem>>, vector<2x50xf32>,
    %c0_72 = arith.constant 0 : index
    %c0_73 = arith.constant 0 : index
    %90 = vector.load %arg26[%c0_72, %c0_73] : memref<2x32xf32, #tpu.memory_space<vmem>>, vector<2x32xf32>
    tpu.vector_store %arg26[%c0_72, %c0_73], %77 {strides = array<i32>} : memref<2x32xf32, #tpu.memory_space<vmem>>, vector<2x32xf32>,
    return
  }
}

</mosaic_0001>

<llo_original>
// kernel: decoder_pallas.1
$region0: #{decoder_pallas.1}
  #allocation0 [shape = 'u32[]', space=smem, size = 0x4, offset = 0x4, fixed_abs, tag = 'smem constant byte address 0x4 - core index']
  #allocation1 [shape = 'u32[144,128]{1,0:T(1,128)}', space=vmem, size = 0x12000, scoped, tag = 'internal scratch']
  %s0 = inlined_call_operand.vmem [shape: f32[2,32], index: 0, kind: input, shape index: {}]
  %s1 = inlined_call_operand.vmem [shape: f32[2,32], index: 1, kind: input, shape index: {}]
  %s2 = inlined_call_operand.vmem [shape: f32[16,64], index: 2, kind: input, shape index: {}]
  %s3 = inlined_call_operand.vmem [shape: f32[16,2], index: 3, kind: input, shape index: {}]
  %s4 = inlined_call_operand.vmem [shape: f32[2,16], index: 4, kind: input, shape index: {}]
  %s5 = inlined_call_operand.vmem [shape: f32[32,32], index: 5, kind: input, shape index: {}]
  %s6 = inlined_call_operand.vmem [shape: f32[64,32], index: 6, kind: input, shape index: {}]
  %s7 = inlined_call_operand.vmem [shape: f32[32,1], index: 7, kind: input, shape index: {}]
  %s8 = inlined_call_operand.vmem [shape: f32[32,32], index: 8, kind: input, shape index: {}]
  %s9 = inlined_call_operand.vmem [shape: f32[64,32], index: 9, kind: input, shape index: {}]
  %s10 = inlined_call_operand.vmem [shape: f32[32,32], index: 10, kind: input, shape index: {}]
  %s11 = inlined_call_operand.vmem [shape: f32[1,32], index: 11, kind: input, shape index: {}]
  %s12 = inlined_call_operand.vmem [shape: f32[32,32], index: 12, kind: input, shape index: {}]
  %s13 = inlined_call_operand.vmem [shape: f32[64,32], index: 13, kind: input, shape index: {}]
  %s14 = inlined_call_operand.vmem [shape: f32[32,32], index: 14, kind: input, shape index: {}]
  %s15 = inlined_call_operand.vmem [shape: f32[1,32], index: 15, kind: input, shape index: {}]
  %s16 = inlined_call_operand.vmem [shape: f32[32,32], index: 16, kind: input, shape index: {}]
  %s17 = inlined_call_operand.vmem [shape: f32[64,32], index: 17, kind: input, shape index: {}]
  %s18 = inlined_call_operand.vmem [shape: f32[32,32], index: 18, kind: input, shape index: {}]
  %s19 = inlined_call_operand.vmem [shape: f32[1,32], index: 19, kind: input, shape index: {}]
  %s20 = inlined_call_operand.vmem [shape: f32[1,32], index: 20, kind: input, shape index: {}]
  %s21 = inlined_call_operand.vmem [shape: f32[32,50], index: 21, kind: input, shape index: {}]
  %s22 = inlined_call_operand.vmem [shape: f32[64,50], index: 22, kind: input, shape index: {}]
  %s23 = inlined_call_operand.vmem [shape: f32[32,50], index: 23, kind: input, shape index: {}]
  %s24 = inlined_call_operand.vmem [shape: f32[1,50], index: 24, kind: input, shape index: {}]
  %s25 = inlined_call_operand.hbm [shape: f32[2,50], index: 25, kind: output, shape index: {0}]
  %s26 = inlined_call_operand.hbm [shape: f32[2,32], index: 26, kind: output, shape index: {1}]
  %27 = xla_tuple %s25, %s26
  %s28 = sld [smem:[#allocation0]]
  $region118: #{decoder_pallas.1} parent=0
    _
  %s30 = ssub.s32 1, %s28
  %s31 = scalar_select 0, %s30, %s28
  $region1: #{decoder_pallas.1} parent=0
    #allocation2 [shape = 'u8[1024]{0}', space=vmem, size = 0x400, scoped, tag = 'output window, operand 0, single buffered']
    #allocation3 [shape = 's32[1]{0}', space=sflag, size = 0x4, scoped, tag = 'scoped memory for decoder_pallas.1']
    #allocation4 [shape = 'u8[1024]{0}', space=vmem, size = 0x400, scoped, tag = 'output window, operand 1, single buffered']
    #allocation5 [shape = 's32[1]{0}', space=sflag, size = 0x4, scoped, tag = 'scoped memory for decoder_pallas.1']
    %32 = vsyncpa [#allocation3], 0
    %33 = vsyncpa [#allocation5], 0
    // Predicated region
    $region2: #{decoder_pallas.1} parent=1 // pred_check
      _
    $region3: #{decoder_pallas.1} parent=1 // pred_check_branch
      %35 = sbr.rel (0) target = $region5
    $region4: #{decoder_pallas.1} parent=1 // pred_region
      _
    $region5: #{decoder_pallas.1} parent=1 // pred_fallthru
      _
    // Predicated region
    $region6: #{decoder_pallas.1} parent=1 // pred_check
      _
    $region7: #{decoder_pallas.1} parent=1 // pred_check_branch
      %37 = sbr.rel (0) target = $region9
    $region8: #{decoder_pallas.1} parent=1 // pred_region
      _
    $region9: #{decoder_pallas.1} parent=1 // pred_fallthru
      _
    // Predicated region
    $region10: #{decoder_pallas.1} parent=1 // pred_check
      _
    $region11: #{decoder_pallas.1} parent=1 // pred_check_branch
      %39 = sbr.rel (0) target = $region13
    $region12: #{decoder_pallas.1} parent=1 // pred_region
      _
    $region13: #{decoder_pallas.1} parent=1 // pred_fallthru
      _
    // Predicated region
    $region14: #{decoder_pallas.1} parent=1 // pred_check
      _
    $region15: #{decoder_pallas.1} parent=1 // pred_check_branch
      %41 = sbr.rel (0) target = $region17
    $region16: #{decoder_pallas.1} parent=1 // pred_region
      _
    $region17: #{decoder_pallas.1} parent=1 // pred_fallthru
      _
    // Predicated region
    $region18: #{decoder_pallas.1} parent=1 // pred_check
      _
    $region19: #{decoder_pallas.1} parent=1 // pred_check_branch
      %43 = sbr.rel (0) target = $region21
    $region20: #{decoder_pallas.1} parent=1 // pred_region
      _
    $region21: #{decoder_pallas.1} parent=1 // pred_fallthru
      _
    // Predicated region
    $region22: #{decoder_pallas.1} parent=1 // pred_check
      _
    $region23: #{decoder_pallas.1} parent=1 // pred_check_branch
      %45 = sbr.rel (0) target = $region25
    $region24: #{decoder_pallas.1} parent=1 // pred_region
      _
    $region25: #{decoder_pallas.1} parent=1 // pred_fallthru
      _
    // Predicated region
    $region26: #{decoder_pallas.1} parent=1 // pred_check
      _
    $region27: #{decoder_pallas.1} parent=1 // pred_check_branch
      %47 = sbr.rel (0) target = $region29
    $region28: #{decoder_pallas.1} parent=1 // pred_region
      _
    $region29: #{decoder_pallas.1} parent=1 // pred_fallthru
      _
    // Predicated region
    $region30: #{decoder_pallas.1} parent=1 // pred_check
      _
    $region31: #{decoder_pallas.1} parent=1 // pred_check_branch
      %49 = sbr.rel (0) target = $region33
    $region32: #{decoder_pallas.1} parent=1 // pred_region
      _
    $region33: #{decoder_pallas.1} parent=1 // pred_fallthru
      _
    // Predicated region
    $region34: #{decoder_pallas.1} parent=1 // pred_check
      _
    $region35: #{decoder_pallas.1} parent=1 // pred_check_branch
      %51 = sbr.rel (0) target = $region37
    $region36: #{decoder_pallas.1} parent=1 // pred_region
      _
    $region37: #{decoder_pallas.1} parent=1 // pred_fallthru
      _
    // Predicated region
    $region38: #{decoder_pallas.1} parent=1 // pred_check
      _
    $region39: #{decoder_pallas.1} parent=1 // pred_check_branch
      %53 = sbr.rel (0) target = $region41
    $region40: #{decoder_pallas.1} parent=1 // pred_region
      _
    $region41: #{decoder_pallas.1} parent=1 // pred_fallthru
      _
    // Predicated region
    $region42: #{decoder_pallas.1} parent=1 // pred_check
      _
    $region43: #{decoder_pallas.1} parent=1 // pred_check_branch
      %55 = sbr.rel (0) target = $region45
    $region44: #{decoder_pallas.1} parent=1 // pred_region
      _
    $region45: #{decoder_pallas.1} parent=1 // pred_fallthru
      _
    // Predicated region
    $region46: #{decoder_pallas.1} parent=1 // pred_check
      _
    $region47: #{decoder_pallas.1} parent=1 // pred_check_branch
      %57 = sbr.rel (0) target = $region49
    $region48: #{decoder_pallas.1} parent=1 // pred_region
      _
    $region49: #{decoder_pallas.1} parent=1 // pred_fallthru
      _
    // Predicated region
    $region50: #{decoder_pallas.1} parent=1 // pred_check
      _
    $region51: #{decoder_pallas.1} parent=1 // pred_check_branch
      %59 = sbr.rel (0) target = $region53
    $region52: #{decoder_pallas.1} parent=1 // pred_region
      _
    $region53: #{decoder_pallas.1} parent=1 // pred_fallthru
      _
    // Predicated region
    $region54: #{decoder_pallas.1} parent=1 // pred_check
      _
    $region55: #{decoder_pallas.1} parent=1 // pred_check_branch
      %61 = sbr.rel (0) target = $region57
    $region56: #{decoder_pallas.1} parent=1 // pred_region
      _
    $region57: #{decoder_pallas.1} parent=1 // pred_fallthru
      _
    // Predicated region
    $region58: #{decoder_pallas.1} parent=1 // pred_check
      _
    $region59: #{decoder_pallas.1} parent=1 // pred_check_branch
      %63 = sbr.rel (0) target = $region61
    $region60: #{decoder_pallas.1} parent=1 // pred_region
      _
    $region61: #{decoder_pallas.1} parent=1 // pred_fallthru
      _
    // Predicated region
    $region62: #{decoder_pallas.1} parent=1 // pred_check
      _
    $region63: #{decoder_pallas.1} parent=1 // pred_check_branch
      %65 = sbr.rel (0) target = $region65
    $region64: #{decoder_pallas.1} parent=1 // pred_region
      _
    $region65: #{decoder_pallas.1} parent=1 // pred_fallthru
      _
    // Predicated region
    $region66: #{decoder_pallas.1} parent=1 // pred_check
      _
    $region67: #{decoder_pallas.1} parent=1 // pred_check_branch
      %67 = sbr.rel (0) target = $region69
    $region68: #{decoder_pallas.1} parent=1 // pred_region
      _
    $region69: #{decoder_pallas.1} parent=1 // pred_fallthru
      _
    // Predicated region
    $region70: #{decoder_pallas.1} parent=1 // pred_check
      _
    $region71: #{decoder_pallas.1} parent=1 // pred_check_branch
      %69 = sbr.rel (0) target = $region73
    $region72: #{decoder_pallas.1} parent=1 // pred_region
      _
    $region73: #{decoder_pallas.1} parent=1 // pred_fallthru
      _
    // Predicated region
    $region74: #{decoder_pallas.1} parent=1 // pred_check
      _
    $region75: #{decoder_pallas.1} parent=1 // pred_check_branch
      %71 = sbr.rel (0) target = $region77
    $region76: #{decoder_pallas.1} parent=1 // pred_region
      _
    $region77: #{decoder_pallas.1} parent=1 // pred_fallthru
      _
    // Predicated region
    $region78: #{decoder_pallas.1} parent=1 // pred_check
      _
    $region79: #{decoder_pallas.1} parent=1 // pred_check_branch
      %73 = sbr.rel (0) target = $region81
    $region80: #{decoder_pallas.1} parent=1 // pred_region
      _
    $region81: #{decoder_pallas.1} parent=1 // pred_fallthru
      _
    // Predicated region
    $region82: #{decoder_pallas.1} parent=1 // pred_check
      _
    $region83: #{decoder_pallas.1} parent=1 // pred_check_branch
      %75 = sbr.rel (0) target = $region85
    $region84: #{decoder_pallas.1} parent=1 // pred_region
      _
    $region85: #{decoder_pallas.1} parent=1 // pred_fallthru
      _
    // Predicated region
    $region86: #{decoder_pallas.1} parent=1 // pred_check
      _
    $region87: #{decoder_pallas.1} parent=1 // pred_check_branch
      %77 = sbr.rel (0) target = $region89
    $region88: #{decoder_pallas.1} parent=1 // pred_region
      _
    $region89: #{decoder_pallas.1} parent=1 // pred_fallthru
      _
    // Predicated region
    $region90: #{decoder_pallas.1} parent=1 // pred_check
      _
    $region91: #{decoder_pallas.1} parent=1 // pred_check_branch
      %79 = sbr.rel (0) target = $region93
    $region92: #{decoder_pallas.1} parent=1 // pred_region
      _
    $region93: #{decoder_pallas.1} parent=1 // pred_fallthru
      _
    // Predicated region
    $region94: #{decoder_pallas.1} parent=1 // pred_check
      _
    $region95: #{decoder_pallas.1} parent=1 // pred_check_branch
      %81 = sbr.rel (0) target = $region97
    $region96: #{decoder_pallas.1} parent=1 // pred_region
      _
    $region97: #{decoder_pallas.1} parent=1 // pred_fallthru
      _
    // Predicated region
    $region98: #{decoder_pallas.1} parent=1 // pred_check
      _
    $region99: #{decoder_pallas.1} parent=1 // pred_check_branch
      %83 = sbr.rel (0) target = $region101
    $region100: #{decoder_pallas.1} parent=1 // pred_region
      _
    $region101: #{decoder_pallas.1} parent=1 // pred_fallthru
      _
    %v84 = vld [vmem:[%s0] sm:$0x3]
    %v85 = vld [vmem:[%s1] sm:$0x3]
    %v86 = vld [vmem:[%s2] sm:$0xff]
    %v87 = vld [vmem:[%s2 + $0x8] sm:$0xff]
    %v88 = vld [vmem:[%s3] sm:$0xff]
    %v89 = vld [vmem:[%s3 + $0x8] sm:$0xff]
    %v90 = vld [vmem:[%s4] sm:$0x3]
    %v91 = vld [vmem:[%s5] sm:$0xff]
    %v92 = vld [vmem:[%s5 + $0x8] sm:$0xff]
    %v93 = vld [vmem:[%s5 + $0x10] sm:$0xff]
    %v94 = vld [vmem:[%s5 + $0x18] sm:$0xff]
    %vm95 = vcmask 261120
    %v97 = vsel %vm95, %v85, 0
    %99 = vmatprep.subr.mxu0 0.0
    %100 = vmatpush1.msra.mxu0 %v91
    %101 = vmatprep.subr.mxu0 0.0
    %102 = vmatpush1.msra.mxu0 %v92
    %103 = vmatprep.subr.mxu0 0.0
    %104 = vmatpush1.msra.mxu0 %v93
    %105 = vmatprep.subr.mxu0 0.0
    %106 = vmatpush1.msra.mxu0 %v94
    %107 = vmatprep.subr.mxu0 0.0
    %108 = vmatpush1.msra.mxu0 0.0
    %109 = vmatprep.subr.mxu0 0.0
    %110 = vmatpush1.msra.mxu0 0.0
    %111 = vmatprep.subr.mxu0 0.0
    %112 = vmatpush1.msra.mxu0 0.0
    %113 = vmatprep.subr.mxu0 0.0
    %114 = vmatpush1.msra.mxu0 0.0
    %115 = vmatprep.subr.mxu0 0.0
    %116 = vmatpush1.msra.mxu0 0.0
    %117 = vmatprep.subr.mxu0 0.0
    %118 = vmatpush1.msra.mxu0 0.0
    %119 = vmatprep.subr.mxu0 0.0
    %120 = vmatpush1.msra.mxu0 0.0
    %121 = vmatprep.subr.mxu0 0.0
    %122 = vmatpush1.msra.mxu0 0.0
    %123 = vmatprep.subr.mxu0 0.0
    %124 = vmatpush1.msra.mxu0 0.0
    %125 = vmatprep.subr.mxu0 0.0
    %126 = vmatpush1.msra.mxu0 0.0
    %127 = vmatprep.subr.mxu0 0.0
    %128 = vmatpush1.msra.mxu0 0.0
    %129 = vmatprep.subr.mxu0 0.0
    %130 = vmatpush1.msra.mxu0 0.0
    %131 = vmatprep.subr.mxu0 0.0
    %132 = vmatpush1.msra.mxu0 0.0
    %133 = vmatprep.subr.mxu0 0.0
    %134 = vmatpush1.msra.mxu0 0.0
    %135 = vmatprep.subr.mxu0 0.0
    %136 = vmatpush1.msra.mxu0 0.0
    %137 = vmatprep.subr.mxu0 0.0
    %138 = vmatpush1.msra.mxu0 0.0
    %139 = vmatprep.subr.mxu0 0.0
    %140 = vmatpush1.msra.mxu0 0.0
    %141 = vmatprep.subr.mxu0 0.0
    %142 = vmatpush1.msra.mxu0 0.0
    %143 = vmatprep.subr.mxu0 0.0
    %144 = vmatpush1.msra.mxu0 0.0
    %145 = vmatprep.subr.mxu0 0.0
    %146 = vmatpush1.msra.mxu0 0.0
    %147 = vmatprep.subr.mxu0 0.0
    %148 = vmatpush1.msra.mxu0 0.0
    %149 = vmatprep.subr.mxu0 0.0
    %150 = vmatpush1.msra.mxu0 0.0
    %151 = vmatprep.subr.mxu0 0.0
    %152 = vmatpush1.msra.mxu0 0.0
    %153 = vmatprep.subr.mxu0 0.0
    %154 = vmatpush1.msra.mxu0 0.0
    %155 = vmatprep.subr.mxu0 0.0
    %156 = vmatpush1.msra.mxu0 0.0
    %157 = vmatprep.subr.mxu0 0.0
    %158 = vmatpush1.msra.mxu0 0.0
    %159 = vmatprep.subr.mxu0 0.0
    %160 = vmatpush1.msra.mxu0 0.0
    %161 = vmatprep.subr.mxu0 0.0
    %162 = vmatpush1.msra.mxu0 0.0
    %163 = vmatprep.mubr.f32.mxu0 0.0
    %164 = vmatmul.mubr.f32.gmra.mrb[0].mxu0 %v97
    %v165 = vpop.f32.mrb[0].mxu0
    %v166 = vadd.f32 0.0, %v165
    %v167 = vpop.f32.mrb[0].mxu0
    %168 = vdwg.mxu0
    %v169 = vld [vmem:[%s6] sm:$0xff]
    %v170 = vld [vmem:[%s6 + $0x8] sm:$0xff]
    %v171 = vld [vmem:[%s6 + $0x10] sm:$0xff]
    %v172 = vld [vmem:[%s6 + $0x18] sm:$0xff]
    %v173 = vld [vmem:[%s6 + $0x20] sm:$0xff]
    %v174 = vld [vmem:[%s6 + $0x28] sm:$0xff]
    %v175 = vld [vmem:[%s6 + $0x30] sm:$0xff]
    %v176 = vld [vmem:[%s6 + $0x38] sm:$0xff]
    %vm177 = vcmask 15360
    %v179 = vsel %vm177, %v88, 0
    %v182 = vsel %vm177, %v89, 0
    %vm184 = vcmask 1041408
    %v186 = vsel %vm184, %v166, 0
    %188 = vmatprep.subr.mxu0 0.0
    %189 = vmatpush1.msra.mxu0 %v186
    %190 = vmatprep.subr.mxu0 0.0
    %191 = vmatpush1.msra.mxu0 0.0
    %192 = vmatprep.subr.mxu0 0.0
    %193 = vmatpush1.msra.mxu0 0.0
    %194 = vmatprep.subr.mxu0 0.0
    %195 = vmatpush1.msra.mxu0 0.0
    %196 = vmatprep.subr.mxu0 0.0
    %197 = vmatpush1.msra.mxu0 0.0
    %198 = vmatprep.subr.mxu0 0.0
    %199 = vmatpush1.msra.mxu0 0.0
    %200 = vmatprep.subr.mxu0 0.0
    %201 = vmatpush1.msra.mxu0 0.0
    %202 = vmatprep.subr.mxu0 0.0
    %203 = vmatpush1.msra.mxu0 0.0
    %204 = vmatprep.subr.mxu0 0.0
    %205 = vmatpush1.msra.mxu0 0.0
    %206 = vmatprep.subr.mxu0 0.0
    %207 = vmatpush1.msra.mxu0 0.0
    %208 = vmatprep.subr.mxu0 0.0
    %209 = vmatpush1.msra.mxu0 0.0
    %210 = vmatprep.subr.mxu0 0.0
    %211 = vmatpush1.msra.mxu0 0.0
    %212 = vmatprep.subr.mxu0 0.0
    %213 = vmatpush1.msra.mxu0 0.0
    %214 = vmatprep.subr.mxu0 0.0
    %215 = vmatpush1.msra.mxu0 0.0
    %216 = vmatprep.subr.mxu0 0.0
    %217 = vmatpush1.msra.mxu0 0.0
    %218 = vmatprep.subr.mxu0 0.0
    %219 = vmatpush1.msra.mxu0 0.0
    %220 = vmatprep.subr.mxu0 0.0
    %221 = vmatpush1.msra.mxu0 0.0
    %222 = vmatprep.subr.mxu0 0.0
    %223 = vmatpush1.msra.mxu0 0.0
    %224 = vmatprep.subr.mxu0 0.0
    %225 = vmatpush1.msra.mxu0 0.0
    %226 = vmatprep.subr.mxu0 0.0
    %227 = vmatpush1.msra.mxu0 0.0
    %228 = vmatprep.subr.mxu0 0.0
    %229 = vmatpush1.msra.mxu0 0.0
    %230 = vmatprep.subr.mxu0 0.0
    %231 = vmatpush1.msra.mxu0 0.0
    %232 = vmatprep.subr.mxu0 0.0
    %233 = vmatpush1.msra.mxu0 0.0
    %234 = vmatprep.subr.mxu0 0.0
    %235 = vmatpush1.msra.mxu0 0.0
    %236 = vmatprep.subr.mxu0 0.0
    %237 = vmatpush1.msra.mxu0 0.0
    %238 = vmatprep.subr.mxu0 0.0
    %239 = vmatpush1.msra.mxu0 0.0
    %240 = vmatprep.subr.mxu0 0.0
    %241 = vmatpush1.msra.mxu0 0.0
    %242 = vmatprep.subr.mxu0 0.0
    %243 = vmatpush1.msra.mxu0 0.0
    %244 = vmatprep.subr.mxu0 0.0
    %245 = vmatpush1.msra.mxu0 0.0
    %246 = vmatprep.subr.mxu0 0.0
    %247 = vmatpush1.msra.mxu0 0.0
    %248 = vmatprep.subr.mxu0 0.0
    %249 = vmatpush1.msra.mxu0 0.0
    %250 = vmatprep.subr.mxu0 0.0
    %251 = vmatpush1.msra.mxu0 0.0
    %252 = vmatprep.mubr.f32.mxu0 0.0
    %253 = vmatmul.mubr.f32.gmra.mrb[0].mxu0 %v179
    %v254 = vpop.f32.mrb[0].mxu0
    %v255 = vadd.f32 0.0, %v254
    %v256 = vpop.f32.mrb[0].mxu0
    %257 = vmatprep.mubr.f32.mxu0 0.0
    %258 = vmatmul.mubr.f32.gmra.mrb[0].mxu0 %v182
    %v259 = vpop.f32.mrb[0].mxu0
    %v260 = vadd.f32 0.0, %v259
    %v261 = vpop.f32.mrb[0].mxu0
    %262 = vdwg.mxu0
    %vm263 = vcmask 523264
    %v265 = vsel %vm263, %v86, 0
    %v268 = vsel %vm263, %v87, 0
    %270 = vmatprep.subr.mxu0 0.0
    %271 = vmatpush1.msra.mxu0 %v169
    %272 = vmatprep.subr.mxu0 0.0
    %273 = vmatpush1.msra.mxu0 %v170
    %274 = vmatprep.subr.mxu0 0.0
    %275 = vmatpush1.msra.mxu0 %v171
    %276 = vmatprep.subr.mxu0 0.0
    %277 = vmatpush1.msra.mxu0 %v172
    %278 = vmatprep.subr.mxu0 0.0
    %279 = vmatpush1.msra.mxu0 %v173
    %280 = vmatprep.subr.mxu0 0.0
    %281 = vmatpush1.msra.mxu0 %v174
    %282 = vmatprep.subr.mxu0 0.0
    %283 = vmatpush1.msra.mxu0 %v175
    %284 = vmatprep.subr.mxu0 0.0
    %285 = vmatpush1.msra.mxu0 %v176
    %286 = vmatprep.subr.mxu0 0.0
    %287 = vmatpush1.msra.mxu0 0.0
    %288 = vmatprep.subr.mxu0 0.0
    %289 = vmatpush1.msra.mxu0 0.0
    %290 = vmatprep.subr.mxu0 0.0
    %291 = vmatpush1.msra.mxu0 0.0
    %292 = vmatprep.subr.mxu0 0.0
    %293 = vmatpush1.msra.mxu0 0.0
    %294 = vmatprep.subr.mxu0 0.0
    %295 = vmatpush1.msra.mxu0 0.0
    %296 = vmatprep.subr.mxu0 0.0
    %297 = vmatpush1.msra.mxu0 0.0
    %298 = vmatprep.subr.mxu0 0.0
    %299 = vmatpush1.msra.mxu0 0.0
    %300 = vmatprep.subr.mxu0 0.0
    %301 = vmatpush1.msra.mxu0 0.0
    %302 = vmatprep.subr.mxu0 0.0
    %303 = vmatpush1.msra.mxu0 0.0
    %304 = vmatprep.subr.mxu0 0.0
    %305 = vmatpush1.msra.mxu0 0.0
    %306 = vmatprep.subr.mxu0 0.0
    %307 = vmatpush1.msra.mxu0 0.0
    %308 = vmatprep.subr.mxu0 0.0
    %309 = vmatpush1.msra.mxu0 0.0
    %310 = vmatprep.subr.mxu0 0.0
    %311 = vmatpush1.msra.mxu0 0.0
    %312 = vmatprep.subr.mxu0 0.0
    %313 = vmatpush1.msra.mxu0 0.0
    %314 = vmatprep.subr.mxu0 0.0
    %315 = vmatpush1.msra.mxu0 0.0
    %316 = vmatprep.subr.mxu0 0.0
    %317 = vmatpush1.msra.mxu0 0.0
    %318 = vmatprep.subr.mxu0 0.0
    %319 = vmatpush1.msra.mxu0 0.0
    %320 = vmatprep.subr.mxu0 0.0
    %321 = vmatpush1.msra.mxu0 0.0
    %322 = vmatprep.subr.mxu0 0.0
    %323 = vmatpush1.msra.mxu0 0.0
    %324 = vmatprep.subr.mxu0 0.0
    %325 = vmatpush1.msra.mxu0 0.0
    %326 = vmatprep.subr.mxu0 0.0
    %327 = vmatpush1.msra.mxu0 0.0
    %328 = vmatprep.subr.mxu0 0.0
    %329 = vmatpush1.msra.mxu0 0.0
    %330 = vmatprep.subr.mxu0 0.0
    %331 = vmatpush1.msra.mxu0 0.0
    %332 = vmatprep.subr.mxu0 0.0
    %333 = vmatpush1.msra.mxu0 0.0
    %334 = vmatprep.mubr.f32.mxu0 0.0
    %335 = vmatmul.mubr.f32.gmra.mrb[0].mxu0 %v265
    %v336 = vpop.f32.mrb[0].mxu0
    %v337 = vadd.f32 %v255, %v336
    %v338 = vpop.f32.mrb[0].mxu0
    %339 = vmatprep.mubr.f32.mxu0 0.0
    %340 = vmatmul.mubr.f32.gmra.mrb[0].mxu0 %v268
    %v341 = vpop.f32.mrb[0].mxu0
    %v342 = vadd.f32 %v260, %v341
    %v343 = vpop.f32.mrb[0].mxu0
    %344 = vdwg.mxu0
    %v345 = vtanh.pop %v337
    %v346 = vtanh.pop %v342
    %v347 = vld [vmem:[%s7] sm:$0xff]
    %v348 = vld [vmem:[%s7 + $0x8] sm:$0xff]
    %v349 = vld [vmem:[%s7 + $0x10] sm:$0xff]
    %v350 = vld [vmem:[%s7 + $0x18] sm:$0xff]
    %v352 = vsel %vm95, %v345, 0
    %v355 = vsel %vm95, %v346, 0
    %357 = vmatprep.subr.mxu0 0.0
    %358 = vmatpush1.msra.mxu0 %v347
    %359 = vmatprep.subr.mxu0 0.0
    %360 = vmatpush1.msra.mxu0 %v348
    %361 = vmatprep.subr.mxu0 0.0
    %362 = vmatpush1.msra.mxu0 %v349
    %363 = vmatprep.subr.mxu0 0.0
    %364 = vmatpush1.msra.mxu0 %v350
    %365 = vmatprep.subr.mxu0 0.0
    %366 = vmatpush1.msra.mxu0 0.0
    %367 = vmatprep.subr.mxu0 0.0
    %368 = vmatpush1.msra.mxu0 0.0
    %369 = vmatprep.subr.mxu0 0.0
    %370 = vmatpush1.msra.mxu0 0.0
    %371 = vmatprep.subr.mxu0 0.0
    %372 = vmatpush1.msra.mxu0 0.0
    %373 = vmatprep.subr.mxu0 0.0
    %374 = vmatpush1.msra.mxu0 0.0
    %375 = vmatprep.subr.mxu0 0.0
    %376 = vmatpush1.msra.mxu0 0.0
    %377 = vmatprep.subr.mxu0 0.0
    %378 = vmatpush1.msra.mxu0 0.0
    %379 = vmatprep.subr.mxu0 0.0
    %380 = vmatpush1.msra.mxu0 0.0
    %381 = vmatprep.subr.mxu0 0.0
    %382 = vmatpush1.msra.mxu0 0.0
    %383 = vmatprep.subr.mxu0 0.0
    %384 = vmatpush1.msra.mxu0 0.0
    %385 = vmatprep.subr.mxu0 0.0
    %386 = vmatpush1.msra.mxu0 0.0
    %387 = vmatprep.subr.mxu0 0.0
    %388 = vmatpush1.msra.mxu0 0.0
    %389 = vmatprep.subr.mxu0 0.0
    %390 = vmatpush1.msra.mxu0 0.0
    %391 = vmatprep.subr.mxu0 0.0
    %392 = vmatpush1.msra.mxu0 0.0
    %393 = vmatprep.subr.mxu0 0.0
    %394 = vmatpush1.msra.mxu0 0.0
    %395 = vmatprep.subr.mxu0 0.0
    %396 = vmatpush1.msra.mxu0 0.0
    %397 = vmatprep.subr.mxu0 0.0
    %398 = vmatpush1.msra.mxu0 0.0
    %399 = vmatprep.subr.mxu0 0.0
    %400 = vmatpush1.msra.mxu0 0.0
    %401 = vmatprep.subr.mxu0 0.0
    %402 = vmatpush1.msra.mxu0 0.0
    %403 = vmatprep.subr.mxu0 0.0
    %404 = vmatpush1.msra.mxu0 0.0
    %405 = vmatprep.subr.mxu0 0.0
    %406 = vmatpush1.msra.mxu0 0.0
    %407 = vmatprep.subr.mxu0 0.0
    %408 = vmatpush1.msra.mxu0 0.0
    %409 = vmatprep.subr.mxu0 0.0
    %410 = vmatpush1.msra.mxu0 0.0
    %411 = vmatprep.subr.mxu0 0.0
    %412 = vmatpush1.msra.mxu0 0.0
    %413 = vmatprep.subr.mxu0 0.0
    %414 = vmatpush1.msra.mxu0 0.0
    %415 = vmatprep.subr.mxu0 0.0
    %416 = vmatpush1.msra.mxu0 0.0
    %417 = vmatprep.subr.mxu0 0.0
    %418 = vmatpush1.msra.mxu0 0.0
    %419 = vmatprep.subr.mxu0 0.0
    %420 = vmatpush1.msra.mxu0 0.0
    %421 = vmatprep.mubr.f32.mxu0 0.0
    %422 = vmatmul.mubr.f32.gmra.mrb[0].mxu0 %v352
    %v423 = vpop.f32.mrb[0].mxu0
    %v424 = vadd.f32 0.0, %v423
    %v425 = vpop.f32.mrb[0].mxu0
    %426 = vmatprep.mubr.f32.mxu0 0.0
    %427 = vmatmul.mubr.f32.gmra.mrb[0].mxu0 %v355
    %v428 = vpop.f32.mrb[0].mxu0
    %v429 = vadd.f32 0.0, %v428
    %v430 = vpop.f32.mrb[0].mxu0
    %431 = vdwg.mxu0
    %vm432 = vcmask 7168
    %v433 = vsel %vm432, %v424, -inf
    %v434 = vsel %vm432, %v429, -inf
    %v435 = vmax.f32 %v433, %v434
    %v436 = vrot.slane %v435, 4
    %v437 = vmax.f32 %v435, %v436
    %v438 = vrot.slane %v437, 2
    %v439 = vmax.f32 %v437, %v438
    %v440 = vrot.slane %v439, 1
    %v441 = vmax.f32 %v439, %v440
    %v442 = vsub.f32 %v424, %v441
    %v443 = vsub.f32 %v429, %v441
    %v444 = vmul.f32 %v442, 1.442695
    %v445 = vpow.pop %v444
    %v446 = vmul.f32 %v443, 1.442695
    %v447 = vpow.pop %v446
    %vm448 = vcmask 130048
    %v450 = vsel %vm448, %v90, 0
    %452 = vmatprep.subr.mxu0 0.0
    %453 = vmatpush1.msra.mxu0 %v445
    %454 = vmatprep.subr.mxu0 0.0
    %455 = vmatpush1.msra.mxu0 %v447
    %456 = vmatprep.subr.mxu0 0.0
    %457 = vmatpush1.msra.mxu0 0.0
    %458 = vmatprep.subr.mxu0 0.0
    %459 = vmatpush1.msra.mxu0 0.0
    %460 = vmatprep.subr.mxu0 0.0
    %461 = vmatpush1.msra.mxu0 0.0
    %462 = vmatprep.subr.mxu0 0.0
    %463 = vmatpush1.msra.mxu0 0.0
    %464 = vmatprep.subr.mxu0 0.0
    %465 = vmatpush1.msra.mxu0 0.0
    %466 = vmatprep.subr.mxu0 0.0
    %467 = vmatpush1.msra.mxu0 0.0
    %468 = vmatprep.subr.mxu0 0.0
    %469 = vmatpush1.msra.mxu0 0.0
    %470 = vmatprep.subr.mxu0 0.0
    %471 = vmatpush1.msra.mxu0 0.0
    %472 = vmatprep.subr.mxu0 0.0
    %473 = vmatpush1.msra.mxu0 0.0
    %474 = vmatprep.subr.mxu0 0.0
    %475 = vmatpush1.msra.mxu0 0.0
    %476 = vmatprep.subr.mxu0 0.0
    %477 = vmatpush1.msra.mxu0 0.0
    %478 = vmatprep.subr.mxu0 0.0
    %479 = vmatpush1.msra.mxu0 0.0
    %480 = vmatprep.subr.mxu0 0.0
    %481 = vmatpush1.msra.mxu0 0.0
    %482 = vmatprep.subr.mxu0 0.0
    %483 = vmatpush1.msra.mxu0 0.0
    %484 = vmatprep.subr.mxu0 0.0
    %485 = vmatpush1.msra.mxu0 0.0
    %486 = vmatprep.subr.mxu0 0.0
    %487 = vmatpush1.msra.mxu0 0.0
    %488 = vmatprep.subr.mxu0 0.0
    %489 = vmatpush1.msra.mxu0 0.0
    %490 = vmatprep.subr.mxu0 0.0
    %491 = vmatpush1.msra.mxu0 0.0
    %492 = vmatprep.subr.mxu0 0.0
    %493 = vmatpush1.msra.mxu0 0.0
    %494 = vmatprep.subr.mxu0 0.0
    %495 = vmatpush1.msra.mxu0 0.0
    %496 = vmatprep.subr.mxu0 0.0
    %497 = vmatpush1.msra.mxu0 0.0
    %498 = vmatprep.subr.mxu0 0.0
    %499 = vmatpush1.msra.mxu0 0.0
    %500 = vmatprep.subr.mxu0 0.0
    %501 = vmatpush1.msra.mxu0 0.0
    %502 = vmatprep.subr.mxu0 0.0
    %503 = vmatpush1.msra.mxu0 0.0
    %504 = vmatprep.subr.mxu0 0.0
    %505 = vmatpush1.msra.mxu0 0.0
    %506 = vmatprep.subr.mxu0 0.0
    %507 = vmatpush1.msra.mxu0 0.0
    %508 = vmatprep.subr.mxu0 0.0
    %509 = vmatpush1.msra.mxu0 0.0
    %510 = vmatprep.subr.mxu0 0.0
    %511 = vmatpush1.msra.mxu0 0.0
    %512 = vmatprep.subr.mxu0 0.0
    %513 = vmatpush1.msra.mxu0 0.0
    %514 = vmatprep.subr.mxu0 0.0
    %515 = vmatpush1.msra.mxu0 0.0
    %516 = vmatprep.mubr.f32.mxu0 0.0
    %517 = vmatmul.mubr.f32.gmra.mrb[0].mxu0 %v450
    %v518 = vpop.f32.mrb[0].mxu0
    %v519 = vadd.f32 0.0, %v518
    %v520 = vpop.f32.mrb[0].mxu0
    %521 = vdwg.mxu0
    %523 = vset.pattern.permute.xlu0 0
    %524 = vperm.xlu0 %523, %v445
    %v525 = vpop.permute.xlu0 %524
    %528 = vset.pattern.permute.xlu0 0
    %529 = vperm.xlu0 %528, %v447
    %v530 = vpop.permute.xlu0 %529
    %v532 = vmul.f32 %v525, %v86
    %v533 = vmul.f32 %v530, %v87
    %534 = vmatprep.subr.mxu0 0.0
    %535 = vmatpush1.msra.mxu0 %v532
    %536 = vmatprep.subr.mxu0 0.0
    %537 = vmatpush1.msra.mxu0 %v533
    %538 = vmatprep.subr.mxu0 0.0
    %539 = vmatpush1.msra.mxu0 0.0
    %540 = vmatprep.subr.mxu0 0.0
    %541 = vmatpush1.msra.mxu0 0.0
    %542 = vmatprep.subr.mxu0 0.0
    %543 = vmatpush1.msra.mxu0 0.0
    %544 = vmatprep.subr.mxu0 0.0
    %545 = vmatpush1.msra.mxu0 0.0
    %546 = vmatprep.subr.mxu0 0.0
    %547 = vmatpush1.msra.mxu0 0.0
    %548 = vmatprep.subr.mxu0 0.0
    %549 = vmatpush1.msra.mxu0 0.0
    %550 = vmatprep.subr.mxu0 0.0
    %551 = vmatpush1.msra.mxu0 0.0
    %552 = vmatprep.subr.mxu0 0.0
    %553 = vmatpush1.msra.mxu0 0.0
    %554 = vmatprep.subr.mxu0 0.0
    %555 = vmatpush1.msra.mxu0 0.0
    %556 = vmatprep.subr.mxu0 0.0
    %557 = vmatpush1.msra.mxu0 0.0
    %558 = vmatprep.subr.mxu0 0.0
    %559 = vmatpush1.msra.mxu0 0.0
    %560 = vmatprep.subr.mxu0 0.0
    %561 = vmatpush1.msra.mxu0 0.0
    %562 = vmatprep.subr.mxu0 0.0
    %563 = vmatpush1.msra.mxu0 0.0
    %564 = vmatprep.subr.mxu0 0.0
    %565 = vmatpush1.msra.mxu0 0.0
    %566 = vmatprep.subr.mxu0 0.0
    %567 = vmatpush1.msra.mxu0 0.0
    %568 = vmatprep.subr.mxu0 0.0
    %569 = vmatpush1.msra.mxu0 0.0
    %570 = vmatprep.subr.mxu0 0.0
    %571 = vmatpush1.msra.mxu0 0.0
    %572 = vmatprep.subr.mxu0 0.0
    %573 = vmatpush1.msra.mxu0 0.0
    %574 = vmatprep.subr.mxu0 0.0
    %575 = vmatpush1.msra.mxu0 0.0
    %576 = vmatprep.subr.mxu0 0.0
    %577 = vmatpush1.msra.mxu0 0.0
    %578 = vmatprep.subr.mxu0 0.0
    %579 = vmatpush1.msra.mxu0 0.0
    %580 = vmatprep.subr.mxu0 0.0
    %581 = vmatpush1.msra.mxu0 0.0
    %582 = vmatprep.subr.mxu0 0.0
    %583 = vmatpush1.msra.mxu0 0.0
    %584 = vmatprep.subr.mxu0 0.0
    %585 = vmatpush1.msra.mxu0 0.0
    %586 = vmatprep.subr.mxu0 0.0
    %587 = vmatpush1.msra.mxu0 0.0
    %588 = vmatprep.subr.mxu0 0.0
    %589 = vmatpush1.msra.mxu0 0.0
    %590 = vmatprep.subr.mxu0 0.0
    %591 = vmatpush1.msra.mxu0 0.0
    %592 = vmatprep.subr.mxu0 0.0
    %593 = vmatpush1.msra.mxu0 0.0
    %594 = vmatprep.subr.mxu0 0.0
    %595 = vmatpush1.msra.mxu0 0.0
    %596 = vmatprep.subr.mxu0 0.0
    %597 = vmatpush1.msra.mxu0 0.0
    %598 = vmatprep.mubr.f32.mxu0 0.0
    %599 = vmatmul.mubr.f32.gmra.mrb[0].mxu0 %v450
    %v600 = vpop.f32.mrb[0].mxu0
    %v601 = vadd.f32 0.0, %v600
    %v602 = vpop.f32.mrb[0].mxu0
    %603 = vdwg.mxu0
    %605 = vset.pattern.permute.xlu0 0
    %606 = vperm.xlu0 %605, %v519
    %v607 = vpop.permute.xlu0 %606
    %v609 = vrcp.pop %v607
    %v610 = vmul.f32 %v601, %v609
    %v611 = vld [vmem:[%s8] sm:$0xff]
    %v612 = vld [vmem:[%s8 + $0x8] sm:$0xff]
    %v613 = vld [vmem:[%s8 + $0x10] sm:$0xff]
    %v614 = vld [vmem:[%s8 + $0x18] sm:$0xff]
    %v615 = vld [vmem:[%s9] sm:$0xff]
    %v616 = vld [vmem:[%s9 + $0x8] sm:$0xff]
    %v617 = vld [vmem:[%s9 + $0x10] sm:$0xff]
    %v618 = vld [vmem:[%s9 + $0x18] sm:$0xff]
    %v619 = vld [vmem:[%s9 + $0x20] sm:$0xff]
    %v620 = vld [vmem:[%s9 + $0x28] sm:$0xff]
    %v621 = vld [vmem:[%s9 + $0x30] sm:$0xff]
    %v622 = vld [vmem:[%s9 + $0x38] sm:$0xff]
    %v624 = vsel %vm263, %v610, 0
    %626 = vmatprep.subr.mxu0 0.0
    %627 = vmatpush1.msra.mxu0 %v615
    %628 = vmatprep.subr.mxu0 0.0
    %629 = vmatpush1.msra.mxu0 %v616
    %630 = vmatprep.subr.mxu0 0.0
    %631 = vmatpush1.msra.mxu0 %v617
    %632 = vmatprep.subr.mxu0 0.0
    %633 = vmatpush1.msra.mxu0 %v618
    %634 = vmatprep.subr.mxu0 0.0
    %635 = vmatpush1.msra.mxu0 %v619
    %636 = vmatprep.subr.mxu0 0.0
    %637 = vmatpush1.msra.mxu0 %v620
    %638 = vmatprep.subr.mxu0 0.0
    %639 = vmatpush1.msra.mxu0 %v621
    %640 = vmatprep.subr.mxu0 0.0
    %641 = vmatpush1.msra.mxu0 %v622
    %642 = vmatprep.subr.mxu0 0.0
    %643 = vmatpush1.msra.mxu0 0.0
    %644 = vmatprep.subr.mxu0 0.0
    %645 = vmatpush1.msra.mxu0 0.0
    %646 = vmatprep.subr.mxu0 0.0
    %647 = vmatpush1.msra.mxu0 0.0
    %648 = vmatprep.subr.mxu0 0.0
    %649 = vmatpush1.msra.mxu0 0.0
    %650 = vmatprep.subr.mxu0 0.0
    %651 = vmatpush1.msra.mxu0 0.0
    %652 = vmatprep.subr.mxu0 0.0
    %653 = vmatpush1.msra.mxu0 0.0
    %654 = vmatprep.subr.mxu0 0.0
    %655 = vmatpush1.msra.mxu0 0.0
    %656 = vmatprep.subr.mxu0 0.0
    %657 = vmatpush1.msra.mxu0 0.0
    %658 = vmatprep.subr.mxu0 0.0
    %659 = vmatpush1.msra.mxu0 0.0
    %660 = vmatprep.subr.mxu0 0.0
    %661 = vmatpush1.msra.mxu0 0.0
    %662 = vmatprep.subr.mxu0 0.0
    %663 = vmatpush1.msra.mxu0 0.0
    %664 = vmatprep.subr.mxu0 0.0
    %665 = vmatpush1.msra.mxu0 0.0
    %666 = vmatprep.subr.mxu0 0.0
    %667 = vmatpush1.msra.mxu0 0.0
    %668 = vmatprep.subr.mxu0 0.0
    %669 = vmatpush1.msra.mxu0 0.0
    %670 = vmatprep.subr.mxu0 0.0
    %671 = vmatpush1.msra.mxu0 0.0
    %672 = vmatprep.subr.mxu0 0.0
    %673 = vmatpush1.msra.mxu0 0.0
    %674 = vmatprep.subr.mxu0 0.0
    %675 = vmatpush1.msra.mxu0 0.0
    %676 = vmatprep.subr.mxu0 0.0
    %677 = vmatpush1.msra.mxu0 0.0
    %678 = vmatprep.subr.mxu0 0.0
    %679 = vmatpush1.msra.mxu0 0.0
    %680 = vmatprep.subr.mxu0 0.0
    %681 = vmatpush1.msra.mxu0 0.0
    %682 = vmatprep.subr.mxu0 0.0
    %683 = vmatpush1.msra.mxu0 0.0
    %684 = vmatprep.subr.mxu0 0.0
    %685 = vmatpush1.msra.mxu0 0.0
    %686 = vmatprep.subr.mxu0 0.0
    %687 = vmatpush1.msra.mxu0 0.0
    %688 = vmatprep.subr.mxu0 0.0
    %689 = vmatpush1.msra.mxu0 0.0
    %690 = vmatprep.mubr.f32.mxu0 0.0
    %691 = vmatmul.mubr.f32.gmra.mrb[0].mxu0 %v624
    %v692 = vpop.f32.mrb[0].mxu0
    %v693 = vadd.f32 0.0, %v692
    %v694 = vpop.f32.mrb[0].mxu0
    %695 = vdwg.mxu0
    %v697 = vsel %vm95, %v84, 0
    %699 = vmatprep.subr.mxu0 0.0
    %700 = vmatpush1.msra.mxu0 %v611
    %701 = vmatprep.subr.mxu0 0.0
    %702 = vmatpush1.msra.mxu0 %v612
    %703 = vmatprep.subr.mxu0 0.0
    %704 = vmatpush1.msra.mxu0 %v613
    %705 = vmatprep.subr.mxu0 0.0
    %706 = vmatpush1.msra.mxu0 %v614
    %707 = vmatprep.subr.mxu0 0.0
    %708 = vmatpush1.msra.mxu0 0.0
    %709 = vmatprep.subr.mxu0 0.0
    %710 = vmatpush1.msra.mxu0 0.0
    %711 = vmatprep.subr.mxu0 0.0
    %712 = vmatpush1.msra.mxu0 0.0
    %713 = vmatprep.subr.mxu0 0.0
    %714 = vmatpush1.msra.mxu0 0.0
    %715 = vmatprep.subr.mxu0 0.0
    %716 = vmatpush1.msra.mxu0 0.0
    %717 = vmatprep.subr.mxu0 0.0
    %718 = vmatpush1.msra.mxu0 0.0
    %719 = vmatprep.subr.mxu0 0.0
    %720 = vmatpush1.msra.mxu0 0.0
    %721 = vmatprep.subr.mxu0 0.0
    %722 = vmatpush1.msra.mxu0 0.0
    %723 = vmatprep.subr.mxu0 0.0
    %724 = vmatpush1.msra.mxu0 0.0
    %725 = vmatprep.subr.mxu0 0.0
    %726 = vmatpush1.msra.mxu0 0.0
    %727 = vmatprep.subr.mxu0 0.0
    %728 = vmatpush1.msra.mxu0 0.0
    %729 = vmatprep.subr.mxu0 0.0
    %730 = vmatpush1.msra.mxu0 0.0
    %731 = vmatprep.subr.mxu0 0.0
    %732 = vmatpush1.msra.mxu0 0.0
    %733 = vmatprep.subr.mxu0 0.0
    %734 = vmatpush1.msra.mxu0 0.0
    %735 = vmatprep.subr.mxu0 0.0
    %736 = vmatpush1.msra.mxu0 0.0
    %737 = vmatprep.subr.mxu0 0.0
    %738 = vmatpush1.msra.mxu0 0.0
    %739 = vmatprep.subr.mxu0 0.0
    %740 = vmatpush1.msra.mxu0 0.0
    %741 = vmatprep.subr.mxu0 0.0
    %742 = vmatpush1.msra.mxu0 0.0
    %743 = vmatprep.subr.mxu0 0.0
    %744 = vmatpush1.msra.mxu0 0.0
    %745 = vmatprep.subr.mxu0 0.0
    %746 = vmatpush1.msra.mxu0 0.0
    %747 = vmatprep.subr.mxu0 0.0
    %748 = vmatpush1.msra.mxu0 0.0
    %749 = vmatprep.subr.mxu0 0.0
    %750 = vmatpush1.msra.mxu0 0.0
    %751 = vmatprep.subr.mxu0 0.0
    %752 = vmatpush1.msra.mxu0 0.0
    %753 = vmatprep.subr.mxu0 0.0
    %754 = vmatpush1.msra.mxu0 0.0
    %755 = vmatprep.subr.mxu0 0.0
    %756 = vmatpush1.msra.mxu0 0.0
    %757 = vmatprep.subr.mxu0 0.0
    %758 = vmatpush1.msra.mxu0 0.0
    %759 = vmatprep.subr.mxu0 0.0
    %760 = vmatpush1.msra.mxu0 0.0
    %761 = vmatprep.subr.mxu0 0.0
    %762 = vmatpush1.msra.mxu0 0.0
    %763 = vmatprep.mubr.f32.mxu0 0.0
    %764 = vmatmul.mubr.f32.gmra.mrb[0].mxu0 %v697
    %v765 = vpop.f32.mrb[0].mxu0
    %v766 = vadd.f32 %v693, %v765
    %v767 = vpop.f32.mrb[0].mxu0
    %768 = vdwg.mxu0
    %v769 = vld [vmem:[%s10] sm:$0xff]
    %v770 = vld [vmem:[%s10 + $0x8] sm:$0xff]
    %v771 = vld [vmem:[%s10 + $0x10] sm:$0xff]
    %v772 = vld [vmem:[%s10 + $0x18] sm:$0xff]
    %773 = vmatprep.subr.mxu0 0.0
    %774 = vmatpush1.msra.mxu0 %v769
    %775 = vmatprep.subr.mxu0 0.0
    %776 = vmatpush1.msra.mxu0 %v770
    %777 = vmatprep.subr.mxu0 0.0
    %778 = vmatpush1.msra.mxu0 %v771
    %779 = vmatprep.subr.mxu0 0.0
    %780 = vmatpush1.msra.mxu0 %v772
    %781 = vmatprep.subr.mxu0 0.0
    %782 = vmatpush1.msra.mxu0 0.0
    %783 = vmatprep.subr.mxu0 0.0
    %784 = vmatpush1.msra.mxu0 0.0
    %785 = vmatprep.subr.mxu0 0.0
    %786 = vmatpush1.msra.mxu0 0.0
    %787 = vmatprep.subr.mxu0 0.0
    %788 = vmatpush1.msra.mxu0 0.0
    %789 = vmatprep.subr.mxu0 0.0
    %790 = vmatpush1.msra.mxu0 0.0
    %791 = vmatprep.subr.mxu0 0.0
    %792 = vmatpush1.msra.mxu0 0.0
    %793 = vmatprep.subr.mxu0 0.0
    %794 = vmatpush1.msra.mxu0 0.0
    %795 = vmatprep.subr.mxu0 0.0
    %796 = vmatpush1.msra.mxu0 0.0
    %797 = vmatprep.subr.mxu0 0.0
    %798 = vmatpush1.msra.mxu0 0.0
    %799 = vmatprep.subr.mxu0 0.0
    %800 = vmatpush1.msra.mxu0 0.0
    %801 = vmatprep.subr.mxu0 0.0
    %802 = vmatpush1.msra.mxu0 0.0
    %803 = vmatprep.subr.mxu0 0.0
    %804 = vmatpush1.msra.mxu0 0.0
    %805 = vmatprep.subr.mxu0 0.0
    %806 = vmatpush1.msra.mxu0 0.0
    %807 = vmatprep.subr.mxu0 0.0
    %808 = vmatpush1.msra.mxu0 0.0
    %809 = vmatprep.subr.mxu0 0.0
    %810 = vmatpush1.msra.mxu0 0.0
    %811 = vmatprep.subr.mxu0 0.0
    %812 = vmatpush1.msra.mxu0 0.0
    %813 = vmatprep.subr.mxu0 0.0
    %814 = vmatpush1.msra.mxu0 0.0
    %815 = vmatprep.subr.mxu0 0.0
    %816 = vmatpush1.msra.mxu0 0.0
    %817 = vmatprep.subr.mxu0 0.0
    %818 = vmatpush1.msra.mxu0 0.0
    %819 = vmatprep.subr.mxu0 0.0
    %820 = vmatpush1.msra.mxu0 0.0
    %821 = vmatprep.subr.mxu0 0.0
    %822 = vmatpush1.msra.mxu0 0.0
    %823 = vmatprep.subr.mxu0 0.0
    %824 = vmatpush1.msra.mxu0 0.0
    %825 = vmatprep.subr.mxu0 0.0
    %826 = vmatpush1.msra.mxu0 0.0
    %827 = vmatprep.subr.mxu0 0.0
    %828 = vmatpush1.msra.mxu0 0.0
    %829 = vmatprep.subr.mxu0 0.0
    %830 = vmatpush1.msra.mxu0 0.0
    %831 = vmatprep.subr.mxu0 0.0
    %832 = vmatpush1.msra.mxu0 0.0
    %833 = vmatprep.subr.mxu0 0.0
    %834 = vmatpush1.msra.mxu0 0.0
    %835 = vmatprep.subr.mxu0 0.0
    %836 = vmatpush1.msra.mxu0 0.0
    %837 = vmatprep.mubr.f32.mxu0 0.0
    %838 = vmatmul.mubr.f32.gmra.mrb[0].mxu0 %v97
    %v839 = vpop.f32.mrb[0].mxu0
    %v840 = vadd.f32 0.0, %v839
    %v841 = vpop.f32.mrb[0].mxu0
    %842 = vdwg.mxu0
    %v843 = vadd.f32 %v766, %v840
    %v844 = vld [vmem:[%s11] sm:$0x1]
    %v846 = vlaneseq
    %v847 = vshrl.u32 %v846, 7
    %v848 = vsub.s32 0, %v847
    %v849 = vrot.slane %v844, %v848
    %v851 = vadd.f32 %v843, %v849
    %v852 = vxor.u32 %v851, 2147483648
    %v853 = vmul.f32 %v852, 1.442695
    %v854 = vpow.pop %v853
    %v855 = vadd.f32 %v854, 1.0
    %v856 = vrcp.pop %v855
    %v857 = vmul.f32 1.0, %v856
    %v858 = vld [vmem:[%s12] sm:$0xff]
    %v859 = vld [vmem:[%s12 + $0x8] sm:$0xff]
    %v860 = vld [vmem:[%s12 + $0x10] sm:$0xff]
    %v861 = vld [vmem:[%s12 + $0x18] sm:$0xff]
    %v862 = vld [vmem:[%s13] sm:$0xff]
    %v863 = vld [vmem:[%s13 + $0x8] sm:$0xff]
    %v864 = vld [vmem:[%s13 + $0x10] sm:$0xff]
    %v865 = vld [vmem:[%s13 + $0x18] sm:$0xff]
    %v866 = vld [vmem:[%s13 + $0x20] sm:$0xff]
    %v867 = vld [vmem:[%s13 + $0x28] sm:$0xff]
    %v868 = vld [vmem:[%s13 + $0x30] sm:$0xff]
    %v869 = vld [vmem:[%s13 + $0x38] sm:$0xff]
    %870 = vmatprep.subr.mxu0 0.0
    %871 = vmatpush1.msra.mxu0 %v862
    %872 = vmatprep.subr.mxu0 0.0
    %873 = vmatpush1.msra.mxu0 %v863
    %874 = vmatprep.subr.mxu0 0.0
    %875 = vmatpush1.msra.mxu0 %v864
    %876 = vmatprep.subr.mxu0 0.0
    %877 = vmatpush1.msra.mxu0 %v865
    %878 = vmatprep.subr.mxu0 0.0
    %879 = vmatpush1.msra.mxu0 %v866
    %880 = vmatprep.subr.mxu0 0.0
    %881 = vmatpush1.msra.mxu0 %v867
    %882 = vmatprep.subr.mxu0 0.0
    %883 = vmatpush1.msra.mxu0 %v868
    %884 = vmatprep.subr.mxu0 0.0
    %885 = vmatpush1.msra.mxu0 %v869
    %886 = vmatprep.subr.mxu0 0.0
    %887 = vmatpush1.msra.mxu0 0.0
    %888 = vmatprep.subr.mxu0 0.0
    %889 = vmatpush1.msra.mxu0 0.0
    %890 = vmatprep.subr.mxu0 0.0
    %891 = vmatpush1.msra.mxu0 0.0
    %892 = vmatprep.subr.mxu0 0.0
    %893 = vmatpush1.msra.mxu0 0.0
    %894 = vmatprep.subr.mxu0 0.0
    %895 = vmatpush1.msra.mxu0 0.0
    %896 = vmatprep.subr.mxu0 0.0
    %897 = vmatpush1.msra.mxu0 0.0
    %898 = vmatprep.subr.mxu0 0.0
    %899 = vmatpush1.msra.mxu0 0.0
    %900 = vmatprep.subr.mxu0 0.0
    %901 = vmatpush1.msra.mxu0 0.0
    %902 = vmatprep.subr.mxu0 0.0
    %903 = vmatpush1.msra.mxu0 0.0
    %904 = vmatprep.subr.mxu0 0.0
    %905 = vmatpush1.msra.mxu0 0.0
    %906 = vmatprep.subr.mxu0 0.0
    %907 = vmatpush1.msra.mxu0 0.0
    %908 = vmatprep.subr.mxu0 0.0
    %909 = vmatpush1.msra.mxu0 0.0
    %910 = vmatprep.subr.mxu0 0.0
    %911 = vmatpush1.msra.mxu0 0.0
    %912 = vmatprep.subr.mxu0 0.0
    %913 = vmatpush1.msra.mxu0 0.0
    %914 = vmatprep.subr.mxu0 0.0
    %915 = vmatpush1.msra.mxu0 0.0
    %916 = vmatprep.subr.mxu0 0.0
    %917 = vmatpush1.msra.mxu0 0.0
    %918 = vmatprep.subr.mxu0 0.0
    %919 = vmatpush1.msra.mxu0 0.0
    %920 = vmatprep.subr.mxu0 0.0
    %921 = vmatpush1.msra.mxu0 0.0
    %922 = vmatprep.subr.mxu0 0.0
    %923 = vmatpush1.msra.mxu0 0.0
    %924 = vmatprep.subr.mxu0 0.0
    %925 = vmatpush1.msra.mxu0 0.0
    %926 = vmatprep.subr.mxu0 0.0
    %927 = vmatpush1.msra.mxu0 0.0
    %928 = vmatprep.subr.mxu0 0.0
    %929 = vmatpush1.msra.mxu0 0.0
    %930 = vmatprep.subr.mxu0 0.0
    %931 = vmatpush1.msra.mxu0 0.0
    %932 = vmatprep.subr.mxu0 0.0
    %933 = vmatpush1.msra.mxu0 0.0
    %934 = vmatprep.mubr.f32.mxu0 0.0
    %935 = vmatmul.mubr.f32.gmra.mrb[0].mxu0 %v624
    %v936 = vpop.f32.mrb[0].mxu0
    %v937 = vadd.f32 0.0, %v936
    %v938 = vpop.f32.mrb[0].mxu0
    %939 = vdwg.mxu0
    %940 = vmatprep.subr.mxu0 0.0
    %941 = vmatpush1.msra.mxu0 %v858
    %942 = vmatprep.subr.mxu0 0.0
    %943 = vmatpush1.msra.mxu0 %v859
    %944 = vmatprep.subr.mxu0 0.0
    %945 = vmatpush1.msra.mxu0 %v860
    %946 = vmatprep.subr.mxu0 0.0
    %947 = vmatpush1.msra.mxu0 %v861
    %948 = vmatprep.subr.mxu0 0.0
    %949 = vmatpush1.msra.mxu0 0.0
    %950 = vmatprep.subr.mxu0 0.0
    %951 = vmatpush1.msra.mxu0 0.0
    %952 = vmatprep.subr.mxu0 0.0
    %953 = vmatpush1.msra.mxu0 0.0
    %954 = vmatprep.subr.mxu0 0.0
    %955 = vmatpush1.msra.mxu0 0.0
    %956 = vmatprep.subr.mxu0 0.0
    %957 = vmatpush1.msra.mxu0 0.0
    %958 = vmatprep.subr.mxu0 0.0
    %959 = vmatpush1.msra.mxu0 0.0
    %960 = vmatprep.subr.mxu0 0.0
    %961 = vmatpush1.msra.mxu0 0.0
    %962 = vmatprep.subr.mxu0 0.0
    %963 = vmatpush1.msra.mxu0 0.0
    %964 = vmatprep.subr.mxu0 0.0
    %965 = vmatpush1.msra.mxu0 0.0
    %966 = vmatprep.subr.mxu0 0.0
    %967 = vmatpush1.msra.mxu0 0.0
    %968 = vmatprep.subr.mxu0 0.0
    %969 = vmatpush1.msra.mxu0 0.0
    %970 = vmatprep.subr.mxu0 0.0
    %971 = vmatpush1.msra.mxu0 0.0
    %972 = vmatprep.subr.mxu0 0.0
    %973 = vmatpush1.msra.mxu0 0.0
    %974 = vmatprep.subr.mxu0 0.0
    %975 = vmatpush1.msra.mxu0 0.0
    %976 = vmatprep.subr.mxu0 0.0
    %977 = vmatpush1.msra.mxu0 0.0
    %978 = vmatprep.subr.mxu0 0.0
    %979 = vmatpush1.msra.mxu0 0.0
    %980 = vmatprep.subr.mxu0 0.0
    %981 = vmatpush1.msra.mxu0 0.0
    %982 = vmatprep.subr.mxu0 0.0
    %983 = vmatpush1.msra.mxu0 0.0
    %984 = vmatprep.subr.mxu0 0.0
    %985 = vmatpush1.msra.mxu0 0.0
    %986 = vmatprep.subr.mxu0 0.0
    %987 = vmatpush1.msra.mxu0 0.0
    %988 = vmatprep.subr.mxu0 0.0
    %989 = vmatpush1.msra.mxu0 0.0
    %990 = vmatprep.subr.mxu0 0.0
    %991 = vmatpush1.msra.mxu0 0.0
    %992 = vmatprep.subr.mxu0 0.0
    %993 = vmatpush1.msra.mxu0 0.0
    %994 = vmatprep.subr.mxu0 0.0
    %995 = vmatpush1.msra.mxu0 0.0
    %996 = vmatprep.subr.mxu0 0.0
    %997 = vmatpush1.msra.mxu0 0.0
    %998 = vmatprep.subr.mxu0 0.0
    %999 = vmatpush1.msra.mxu0 0.0
    %1000 = vmatprep.subr.mxu0 0.0
    %1001 = vmatpush1.msra.mxu0 0.0
    %1002 = vmatprep.subr.mxu0 0.0
    %1003 = vmatpush1.msra.mxu0 0.0
    %1004 = vmatprep.mubr.f32.mxu0 0.0
    %1005 = vmatmul.mubr.f32.gmra.mrb[0].mxu0 %v697
    %v1006 = vpop.f32.mrb[0].mxu0
    %v1007 = vadd.f32 %v937, %v1006
    %v1008 = vpop.f32.mrb[0].mxu0
    %1009 = vdwg.mxu0
    %v1010 = vld [vmem:[%s14] sm:$0xff]
    %v1011 = vld [vmem:[%s14 + $0x8] sm:$0xff]
    %v1012 = vld [vmem:[%s14 + $0x10] sm:$0xff]
    %v1013 = vld [vmem:[%s14 + $0x18] sm:$0xff]
    %1014 = vmatprep.subr.mxu0 0.0
    %1015 = vmatpush1.msra.mxu0 %v1010
    %1016 = vmatprep.subr.mxu0 0.0
    %1017 = vmatpush1.msra.mxu0 %v1011
    %1018 = vmatprep.subr.mxu0 0.0
    %1019 = vmatpush1.msra.mxu0 %v1012
    %1020 = vmatprep.subr.mxu0 0.0
    %1021 = vmatpush1.msra.mxu0 %v1013
    %1022 = vmatprep.subr.mxu0 0.0
    %1023 = vmatpush1.msra.mxu0 0.0
    %1024 = vmatprep.subr.mxu0 0.0
    %1025 = vmatpush1.msra.mxu0 0.0
    %1026 = vmatprep.subr.mxu0 0.0
    %1027 = vmatpush1.msra.mxu0 0.0
    %1028 = vmatprep.subr.mxu0 0.0
    %1029 = vmatpush1.msra.mxu0 0.0
    %1030 = vmatprep.subr.mxu0 0.0
    %1031 = vmatpush1.msra.mxu0 0.0
    %1032 = vmatprep.subr.mxu0 0.0
    %1033 = vmatpush1.msra.mxu0 0.0
    %1034 = vmatprep.subr.mxu0 0.0
    %1035 = vmatpush1.msra.mxu0 0.0
    %1036 = vmatprep.subr.mxu0 0.0
    %1037 = vmatpush1.msra.mxu0 0.0
    %1038 = vmatprep.subr.mxu0 0.0
    %1039 = vmatpush1.msra.mxu0 0.0
    %1040 = vmatprep.subr.mxu0 0.0
    %1041 = vmatpush1.msra.mxu0 0.0
    %1042 = vmatprep.subr.mxu0 0.0
    %1043 = vmatpush1.msra.mxu0 0.0
    %1044 = vmatprep.subr.mxu0 0.0
    %1045 = vmatpush1.msra.mxu0 0.0
    %1046 = vmatprep.subr.mxu0 0.0
    %1047 = vmatpush1.msra.mxu0 0.0
    %1048 = vmatprep.subr.mxu0 0.0
    %1049 = vmatpush1.msra.mxu0 0.0
    %1050 = vmatprep.subr.mxu0 0.0
    %1051 = vmatpush1.msra.mxu0 0.0
    %1052 = vmatprep.subr.mxu0 0.0
    %1053 = vmatpush1.msra.mxu0 0.0
    %1054 = vmatprep.subr.mxu0 0.0
    %1055 = vmatpush1.msra.mxu0 0.0
    %1056 = vmatprep.subr.mxu0 0.0
    %1057 = vmatpush1.msra.mxu0 0.0
    %1058 = vmatprep.subr.mxu0 0.0
    %1059 = vmatpush1.msra.mxu0 0.0
    %1060 = vmatprep.subr.mxu0 0.0
    %1061 = vmatpush1.msra.mxu0 0.0
    %1062 = vmatprep.subr.mxu0 0.0
    %1063 = vmatpush1.msra.mxu0 0.0
    %1064 = vmatprep.subr.mxu0 0.0
    %1065 = vmatpush1.msra.mxu0 0.0
    %1066 = vmatprep.subr.mxu0 0.0
    %1067 = vmatpush1.msra.mxu0 0.0
    %1068 = vmatprep.subr.mxu0 0.0
    %1069 = vmatpush1.msra.mxu0 0.0
    %1070 = vmatprep.subr.mxu0 0.0
    %1071 = vmatpush1.msra.mxu0 0.0
    %1072 = vmatprep.subr.mxu0 0.0
    %1073 = vmatpush1.msra.mxu0 0.0
    %1074 = vmatprep.subr.mxu0 0.0
    %1075 = vmatpush1.msra.mxu0 0.0
    %1076 = vmatprep.subr.mxu0 0.0
    %1077 = vmatpush1.msra.mxu0 0.0
    %1078 = vmatprep.mubr.f32.mxu0 0.0
    %1079 = vmatmul.mubr.f32.gmra.mrb[0].mxu0 %v97
    %v1080 = vpop.f32.mrb[0].mxu0
    %v1081 = vadd.f32 0.0, %v1080
    %v1082 = vpop.f32.mrb[0].mxu0
    %1083 = vdwg.mxu0
    %v1084 = vadd.f32 %v1007, %v1081
    %v1085 = vld [vmem:[%s15] sm:$0x1]
    %v1087 = vlaneseq
    %v1088 = vshrl.u32 %v1087, 7
    %v1089 = vsub.s32 0, %v1088
    %v1090 = vrot.slane %v1085, %v1089
    %v1092 = vadd.f32 %v1084, %v1090
    %v1093 = vxor.u32 %v1092, 2147483648
    %v1094 = vmul.f32 %v1093, 1.442695
    %v1095 = vpow.pop %v1094
    %v1096 = vadd.f32 %v1095, 1.0
    %v1097 = vrcp.pop %v1096
    %v1098 = vmul.f32 1.0, %v1097
    %v1099 = vld [vmem:[%s18] sm:$0xff]
    %v1100 = vld [vmem:[%s18 + $0x8] sm:$0xff]
    %v1101 = vld [vmem:[%s18 + $0x10] sm:$0xff]
    %v1102 = vld [vmem:[%s18 + $0x18] sm:$0xff]
    %v1103 = vld [vmem:[%s20] sm:$0x1]
    %v1105 = vlaneseq
    %v1106 = vshrl.u32 %v1105, 7
    %v1107 = vsub.s32 0, %v1106
    %v1108 = vrot.slane %v1103, %v1107
    %1110 = vmatprep.subr.mxu0 0.0
    %1111 = vmatpush1.msra.mxu0 %v1099
    %1112 = vmatprep.subr.mxu0 0.0
    %1113 = vmatpush1.msra.mxu0 %v1100
    %1114 = vmatprep.subr.mxu0 0.0
    %1115 = vmatpush1.msra.mxu0 %v1101
    %1116 = vmatprep.subr.mxu0 0.0
    %1117 = vmatpush1.msra.mxu0 %v1102
    %1118 = vmatprep.subr.mxu0 0.0
    %1119 = vmatpush1.msra.mxu0 0.0
    %1120 = vmatprep.subr.mxu0 0.0
    %1121 = vmatpush1.msra.mxu0 0.0
    %1122 = vmatprep.subr.mxu0 0.0
    %1123 = vmatpush1.msra.mxu0 0.0
    %1124 = vmatprep.subr.mxu0 0.0
    %1125 = vmatpush1.msra.mxu0 0.0
    %1126 = vmatprep.subr.mxu0 0.0
    %1127 = vmatpush1.msra.mxu0 0.0
    %1128 = vmatprep.subr.mxu0 0.0
    %1129 = vmatpush1.msra.mxu0 0.0
    %1130 = vmatprep.subr.mxu0 0.0
    %1131 = vmatpush1.msra.mxu0 0.0
    %1132 = vmatprep.subr.mxu0 0.0
    %1133 = vmatpush1.msra.mxu0 0.0
    %1134 = vmatprep.subr.mxu0 0.0
    %1135 = vmatpush1.msra.mxu0 0.0
    %1136 = vmatprep.subr.mxu0 0.0
    %1137 = vmatpush1.msra.mxu0 0.0
    %1138 = vmatprep.subr.mxu0 0.0
    %1139 = vmatpush1.msra.mxu0 0.0
    %1140 = vmatprep.subr.mxu0 0.0
    %1141 = vmatpush1.msra.mxu0 0.0
    %1142 = vmatprep.subr.mxu0 0.0
    %1143 = vmatpush1.msra.mxu0 0.0
    %1144 = vmatprep.subr.mxu0 0.0
    %1145 = vmatpush1.msra.mxu0 0.0
    %1146 = vmatprep.subr.mxu0 0.0
    %1147 = vmatpush1.msra.mxu0 0.0
    %1148 = vmatprep.subr.mxu0 0.0
    %1149 = vmatpush1.msra.mxu0 0.0
    %1150 = vmatprep.subr.mxu0 0.0
    %1151 = vmatpush1.msra.mxu0 0.0
    %1152 = vmatprep.subr.mxu0 0.0
    %1153 = vmatpush1.msra.mxu0 0.0
    %1154 = vmatprep.subr.mxu0 0.0
    %1155 = vmatpush1.msra.mxu0 0.0
    %1156 = vmatprep.subr.mxu0 0.0
    %1157 = vmatpush1.msra.mxu0 0.0
    %1158 = vmatprep.subr.mxu0 0.0
    %1159 = vmatpush1.msra.mxu0 0.0
    %1160 = vmatprep.subr.mxu0 0.0
    %1161 = vmatpush1.msra.mxu0 0.0
    %1162 = vmatprep.subr.mxu0 0.0
    %1163 = vmatpush1.msra.mxu0 0.0
    %1164 = vmatprep.subr.mxu0 0.0
    %1165 = vmatpush1.msra.mxu0 0.0
    %1166 = vmatprep.subr.mxu0 0.0
    %1167 = vmatpush1.msra.mxu0 0.0
    %1168 = vmatprep.subr.mxu0 0.0
    %1169 = vmatpush1.msra.mxu0 0.0
    %1170 = vmatprep.subr.mxu0 0.0
    %1171 = vmatpush1.msra.mxu0 0.0
    %1172 = vmatprep.subr.mxu0 0.0
    %1173 = vmatpush1.msra.mxu0 0.0
    %1174 = vmatprep.mubr.f32.mxu0 0.0
    %1175 = vmatmul.mubr.f32.gmra.mrb[0].mxu0 %v97
    %v1176 = vpop.f32.mrb[0].mxu0
    %v1177 = vadd.f32 %v1108, %v1176
    %v1178 = vpop.f32.mrb[0].mxu0
    %1179 = vdwg.mxu0
    %v1180 = vld [vmem:[%s16] sm:$0xff]
    %v1181 = vld [vmem:[%s16 + $0x8] sm:$0xff]
    %v1182 = vld [vmem:[%s16 + $0x10] sm:$0xff]
    %v1183 = vld [vmem:[%s16 + $0x18] sm:$0xff]
    %v1184 = vld [vmem:[%s17] sm:$0xff]
    %v1185 = vld [vmem:[%s17 + $0x8] sm:$0xff]
    %v1186 = vld [vmem:[%s17 + $0x10] sm:$0xff]
    %v1187 = vld [vmem:[%s17 + $0x18] sm:$0xff]
    %v1188 = vld [vmem:[%s17 + $0x20] sm:$0xff]
    %v1189 = vld [vmem:[%s17 + $0x28] sm:$0xff]
    %v1190 = vld [vmem:[%s17 + $0x30] sm:$0xff]
    %v1191 = vld [vmem:[%s17 + $0x38] sm:$0xff]
    %1192 = vmatprep.subr.mxu0 0.0
    %1193 = vmatpush1.msra.mxu0 %v1184
    %1194 = vmatprep.subr.mxu0 0.0
    %1195 = vmatpush1.msra.mxu0 %v1185
    %1196 = vmatprep.subr.mxu0 0.0
    %1197 = vmatpush1.msra.mxu0 %v1186
    %1198 = vmatprep.subr.mxu0 0.0
    %1199 = vmatpush1.msra.mxu0 %v1187
    %1200 = vmatprep.subr.mxu0 0.0
    %1201 = vmatpush1.msra.mxu0 %v1188
    %1202 = vmatprep.subr.mxu0 0.0
    %1203 = vmatpush1.msra.mxu0 %v1189
    %1204 = vmatprep.subr.mxu0 0.0
    %1205 = vmatpush1.msra.mxu0 %v1190
    %1206 = vmatprep.subr.mxu0 0.0
    %1207 = vmatpush1.msra.mxu0 %v1191
    %1208 = vmatprep.subr.mxu0 0.0
    %1209 = vmatpush1.msra.mxu0 0.0
    %1210 = vmatprep.subr.mxu0 0.0
    %1211 = vmatpush1.msra.mxu0 0.0
    %1212 = vmatprep.subr.mxu0 0.0
    %1213 = vmatpush1.msra.mxu0 0.0
    %1214 = vmatprep.subr.mxu0 0.0
    %1215 = vmatpush1.msra.mxu0 0.0
    %1216 = vmatprep.subr.mxu0 0.0
    %1217 = vmatpush1.msra.mxu0 0.0
    %1218 = vmatprep.subr.mxu0 0.0
    %1219 = vmatpush1.msra.mxu0 0.0
    %1220 = vmatprep.subr.mxu0 0.0
    %1221 = vmatpush1.msra.mxu0 0.0
    %1222 = vmatprep.subr.mxu0 0.0
    %1223 = vmatpush1.msra.mxu0 0.0
    %1224 = vmatprep.subr.mxu0 0.0
    %1225 = vmatpush1.msra.mxu0 0.0
    %1226 = vmatprep.subr.mxu0 0.0
    %1227 = vmatpush1.msra.mxu0 0.0
    %1228 = vmatprep.subr.mxu0 0.0
    %1229 = vmatpush1.msra.mxu0 0.0
    %1230 = vmatprep.subr.mxu0 0.0
    %1231 = vmatpush1.msra.mxu0 0.0
    %1232 = vmatprep.subr.mxu0 0.0
    %1233 = vmatpush1.msra.mxu0 0.0
    %1234 = vmatprep.subr.mxu0 0.0
    %1235 = vmatpush1.msra.mxu0 0.0
    %1236 = vmatprep.subr.mxu0 0.0
    %1237 = vmatpush1.msra.mxu0 0.0
    %1238 = vmatprep.subr.mxu0 0.0
    %1239 = vmatpush1.msra.mxu0 0.0
    %1240 = vmatprep.subr.mxu0 0.0
    %1241 = vmatpush1.msra.mxu0 0.0
    %1242 = vmatprep.subr.mxu0 0.0
    %1243 = vmatpush1.msra.mxu0 0.0
    %1244 = vmatprep.subr.mxu0 0.0
    %1245 = vmatpush1.msra.mxu0 0.0
    %1246 = vmatprep.subr.mxu0 0.0
    %1247 = vmatpush1.msra.mxu0 0.0
    %1248 = vmatprep.subr.mxu0 0.0
    %1249 = vmatpush1.msra.mxu0 0.0
    %1250 = vmatprep.subr.mxu0 0.0
    %1251 = vmatpush1.msra.mxu0 0.0
    %1252 = vmatprep.subr.mxu0 0.0
    %1253 = vmatpush1.msra.mxu0 0.0
    %1254 = vmatprep.subr.mxu0 0.0
    %1255 = vmatpush1.msra.mxu0 0.0
    %1256 = vmatprep.mubr.f32.mxu0 0.0
    %1257 = vmatmul.mubr.f32.gmra.mrb[0].mxu0 %v624
    %v1258 = vpop.f32.mrb[0].mxu0
    %v1259 = vadd.f32 0.0, %v1258
    %v1260 = vpop.f32.mrb[0].mxu0
    %1261 = vdwg.mxu0
    %1262 = vmatprep.subr.mxu0 0.0
    %1263 = vmatpush1.msra.mxu0 %v1180
    %1264 = vmatprep.subr.mxu0 0.0
    %1265 = vmatpush1.msra.mxu0 %v1181
    %1266 = vmatprep.subr.mxu0 0.0
    %1267 = vmatpush1.msra.mxu0 %v1182
    %1268 = vmatprep.subr.mxu0 0.0
    %1269 = vmatpush1.msra.mxu0 %v1183
    %1270 = vmatprep.subr.mxu0 0.0
    %1271 = vmatpush1.msra.mxu0 0.0
    %1272 = vmatprep.subr.mxu0 0.0
    %1273 = vmatpush1.msra.mxu0 0.0
    %1274 = vmatprep.subr.mxu0 0.0
    %1275 = vmatpush1.msra.mxu0 0.0
    %1276 = vmatprep.subr.mxu0 0.0
    %1277 = vmatpush1.msra.mxu0 0.0
    %1278 = vmatprep.subr.mxu0 0.0
    %1279 = vmatpush1.msra.mxu0 0.0
    %1280 = vmatprep.subr.mxu0 0.0
    %1281 = vmatpush1.msra.mxu0 0.0
    %1282 = vmatprep.subr.mxu0 0.0
    %1283 = vmatpush1.msra.mxu0 0.0
    %1284 = vmatprep.subr.mxu0 0.0
    %1285 = vmatpush1.msra.mxu0 0.0
    %1286 = vmatprep.subr.mxu0 0.0
    %1287 = vmatpush1.msra.mxu0 0.0
    %1288 = vmatprep.subr.mxu0 0.0
    %1289 = vmatpush1.msra.mxu0 0.0
    %1290 = vmatprep.subr.mxu0 0.0
    %1291 = vmatpush1.msra.mxu0 0.0
    %1292 = vmatprep.subr.mxu0 0.0
    %1293 = vmatpush1.msra.mxu0 0.0
    %1294 = vmatprep.subr.mxu0 0.0
    %1295 = vmatpush1.msra.mxu0 0.0
    %1296 = vmatprep.subr.mxu0 0.0
    %1297 = vmatpush1.msra.mxu0 0.0
    %1298 = vmatprep.subr.mxu0 0.0
    %1299 = vmatpush1.msra.mxu0 0.0
    %1300 = vmatprep.subr.mxu0 0.0
    %1301 = vmatpush1.msra.mxu0 0.0
    %1302 = vmatprep.subr.mxu0 0.0
    %1303 = vmatpush1.msra.mxu0 0.0
    %1304 = vmatprep.subr.mxu0 0.0
    %1305 = vmatpush1.msra.mxu0 0.0
    %1306 = vmatprep.subr.mxu0 0.0
    %1307 = vmatpush1.msra.mxu0 0.0
    %1308 = vmatprep.subr.mxu0 0.0
    %1309 = vmatpush1.msra.mxu0 0.0
    %1310 = vmatprep.subr.mxu0 0.0
    %1311 = vmatpush1.msra.mxu0 0.0
    %1312 = vmatprep.subr.mxu0 0.0
    %1313 = vmatpush1.msra.mxu0 0.0
    %1314 = vmatprep.subr.mxu0 0.0
    %1315 = vmatpush1.msra.mxu0 0.0
    %1316 = vmatprep.subr.mxu0 0.0
    %1317 = vmatpush1.msra.mxu0 0.0
    %1318 = vmatprep.subr.mxu0 0.0
    %1319 = vmatpush1.msra.mxu0 0.0
    %1320 = vmatprep.subr.mxu0 0.0
    %1321 = vmatpush1.msra.mxu0 0.0
    %1322 = vmatprep.subr.mxu0 0.0
    %1323 = vmatpush1.msra.mxu0 0.0
    %1324 = vmatprep.subr.mxu0 0.0
    %1325 = vmatpush1.msra.mxu0 0.0
    %1326 = vmatprep.mubr.f32.mxu0 0.0
    %1327 = vmatmul.mubr.f32.gmra.mrb[0].mxu0 %v697
    %v1328 = vpop.f32.mrb[0].mxu0
    %v1329 = vadd.f32 %v1259, %v1328
    %v1330 = vpop.f32.mrb[0].mxu0
    %1331 = vdwg.mxu0
    %v1332 = vld [vmem:[%s19] sm:$0x1]
    %v1334 = vlaneseq
    %v1335 = vshrl.u32 %v1334, 7
    %v1336 = vsub.s32 0, %v1335
    %v1337 = vrot.slane %v1332, %v1336
    %v1339 = vadd.f32 %v1329, %v1337
    %v1340 = vmul.f32 %v857, %v1177
    %v1341 = vadd.f32 %v1339, %v1340
    %v1342 = vtanh.pop %v1341
    %v1343 = vsub.f32 1.0, %v1098
    %v1344 = vmul.f32 %v1343, %v1342
    %v1345 = vmul.f32 %v1098, %v85
    %v1346 = vadd.f32 %v1344, %v1345
    %v1347 = vld [vmem:[%s21] sm:$0xff]
    %v1348 = vld [vmem:[%s21 + $0x8] sm:$0xff]
    %v1349 = vld [vmem:[%s21 + $0x10] sm:$0xff]
    %v1350 = vld [vmem:[%s21 + $0x18] sm:$0xff]
    %v1351 = vld [vmem:[%s22] sm:$0xff]
    %v1352 = vld [vmem:[%s22 + $0x8] sm:$0xff]
    %v1353 = vld [vmem:[%s22 + $0x10] sm:$0xff]
    %v1354 = vld [vmem:[%s22 + $0x18] sm:$0xff]
    %v1355 = vld [vmem:[%s22 + $0x20] sm:$0xff]
    %v1356 = vld [vmem:[%s22 + $0x28] sm:$0xff]
    %v1357 = vld [vmem:[%s22 + $0x30] sm:$0xff]
    %v1358 = vld [vmem:[%s22 + $0x38] sm:$0xff]
    %1359 = vmatprep.subr.mxu0 0.0
    %1360 = vmatpush1.msra.mxu0 %v1351
    %1361 = vmatprep.subr.mxu0 0.0
    %1362 = vmatpush1.msra.mxu0 %v1352
    %1363 = vmatprep.subr.mxu0 0.0
    %1364 = vmatpush1.msra.mxu0 %v1353
    %1365 = vmatprep.subr.mxu0 0.0
    %1366 = vmatpush1.msra.mxu0 %v1354
    %1367 = vmatprep.subr.mxu0 0.0
    %1368 = vmatpush1.msra.mxu0 %v1355
    %1369 = vmatprep.subr.mxu0 0.0
    %1370 = vmatpush1.msra.mxu0 %v1356
    %1371 = vmatprep.subr.mxu0 0.0
    %1372 = vmatpush1.msra.mxu0 %v1357
    %1373 = vmatprep.subr.mxu0 0.0
    %1374 = vmatpush1.msra.mxu0 %v1358
    %1375 = vmatprep.subr.mxu0 0.0
    %1376 = vmatpush1.msra.mxu0 0.0
    %1377 = vmatprep.subr.mxu0 0.0
    %1378 = vmatpush1.msra.mxu0 0.0
    %1379 = vmatprep.subr.mxu0 0.0
    %1380 = vmatpush1.msra.mxu0 0.0
    %1381 = vmatprep.subr.mxu0 0.0
    %1382 = vmatpush1.msra.mxu0 0.0
    %1383 = vmatprep.subr.mxu0 0.0
    %1384 = vmatpush1.msra.mxu0 0.0
    %1385 = vmatprep.subr.mxu0 0.0
    %1386 = vmatpush1.msra.mxu0 0.0
    %1387 = vmatprep.subr.mxu0 0.0
    %1388 = vmatpush1.msra.mxu0 0.0
    %1389 = vmatprep.subr.mxu0 0.0
    %1390 = vmatpush1.msra.mxu0 0.0
    %1391 = vmatprep.subr.mxu0 0.0
    %1392 = vmatpush1.msra.mxu0 0.0
    %1393 = vmatprep.subr.mxu0 0.0
    %1394 = vmatpush1.msra.mxu0 0.0
    %1395 = vmatprep.subr.mxu0 0.0
    %1396 = vmatpush1.msra.mxu0 0.0
    %1397 = vmatprep.subr.mxu0 0.0
    %1398 = vmatpush1.msra.mxu0 0.0
    %1399 = vmatprep.subr.mxu0 0.0
    %1400 = vmatpush1.msra.mxu0 0.0
    %1401 = vmatprep.subr.mxu0 0.0
    %1402 = vmatpush1.msra.mxu0 0.0
    %1403 = vmatprep.subr.mxu0 0.0
    %1404 = vmatpush1.msra.mxu0 0.0
    %1405 = vmatprep.subr.mxu0 0.0
    %1406 = vmatpush1.msra.mxu0 0.0
    %1407 = vmatprep.subr.mxu0 0.0
    %1408 = vmatpush1.msra.mxu0 0.0
    %1409 = vmatprep.subr.mxu0 0.0
    %1410 = vmatpush1.msra.mxu0 0.0
    %1411 = vmatprep.subr.mxu0 0.0
    %1412 = vmatpush1.msra.mxu0 0.0
    %1413 = vmatprep.subr.mxu0 0.0
    %1414 = vmatpush1.msra.mxu0 0.0
    %1415 = vmatprep.subr.mxu0 0.0
    %1416 = vmatpush1.msra.mxu0 0.0
    %1417 = vmatprep.subr.mxu0 0.0
    %1418 = vmatpush1.msra.mxu0 0.0
    %1419 = vmatprep.subr.mxu0 0.0
    %1420 = vmatpush1.msra.mxu0 0.0
    %1421 = vmatprep.subr.mxu0 0.0
    %1422 = vmatpush1.msra.mxu0 0.0
    %1423 = vmatprep.mubr.f32.mxu0 0.0
    %1424 = vmatmul.mubr.f32.gmra.mrb[0].mxu0 %v624
    %v1425 = vpop.f32.mrb[0].mxu0
    %v1426 = vadd.f32 0.0, %v1425
    %v1427 = vpop.f32.mrb[0].mxu0
    %1428 = vdwg.mxu0
    %v1430 = vsel %vm95, %v1346, 0
    %1432 = vmatprep.subr.mxu0 0.0
    %1433 = vmatpush1.msra.mxu0 %v1347
    %1434 = vmatprep.subr.mxu0 0.0
    %1435 = vmatpush1.msra.mxu0 %v1348
    %1436 = vmatprep.subr.mxu0 0.0
    %1437 = vmatpush1.msra.mxu0 %v1349
    %1438 = vmatprep.subr.mxu0 0.0
    %1439 = vmatpush1.msra.mxu0 %v1350
    %1440 = vmatprep.subr.mxu0 0.0
    %1441 = vmatpush1.msra.mxu0 0.0
    %1442 = vmatprep.subr.mxu0 0.0
    %1443 = vmatpush1.msra.mxu0 0.0
    %1444 = vmatprep.subr.mxu0 0.0
    %1445 = vmatpush1.msra.mxu0 0.0
    %1446 = vmatprep.subr.mxu0 0.0
    %1447 = vmatpush1.msra.mxu0 0.0
    %1448 = vmatprep.subr.mxu0 0.0
    %1449 = vmatpush1.msra.mxu0 0.0
    %1450 = vmatprep.subr.mxu0 0.0
    %1451 = vmatpush1.msra.mxu0 0.0
    %1452 = vmatprep.subr.mxu0 0.0
    %1453 = vmatpush1.msra.mxu0 0.0
    %1454 = vmatprep.subr.mxu0 0.0
    %1455 = vmatpush1.msra.mxu0 0.0
    %1456 = vmatprep.subr.mxu0 0.0
    %1457 = vmatpush1.msra.mxu0 0.0
    %1458 = vmatprep.subr.mxu0 0.0
    %1459 = vmatpush1.msra.mxu0 0.0
    %1460 = vmatprep.subr.mxu0 0.0
    %1461 = vmatpush1.msra.mxu0 0.0
    %1462 = vmatprep.subr.mxu0 0.0
    %1463 = vmatpush1.msra.mxu0 0.0
    %1464 = vmatprep.subr.mxu0 0.0
    %1465 = vmatpush1.msra.mxu0 0.0
    %1466 = vmatprep.subr.mxu0 0.0
    %1467 = vmatpush1.msra.mxu0 0.0
    %1468 = vmatprep.subr.mxu0 0.0
    %1469 = vmatpush1.msra.mxu0 0.0
    %1470 = vmatprep.subr.mxu0 0.0
    %1471 = vmatpush1.msra.mxu0 0.0
    %1472 = vmatprep.subr.mxu0 0.0
    %1473 = vmatpush1.msra.mxu0 0.0
    %1474 = vmatprep.subr.mxu0 0.0
    %1475 = vmatpush1.msra.mxu0 0.0
    %1476 = vmatprep.subr.mxu0 0.0
    %1477 = vmatpush1.msra.mxu0 0.0
    %1478 = vmatprep.subr.mxu0 0.0
    %1479 = vmatpush1.msra.mxu0 0.0
    %1480 = vmatprep.subr.mxu0 0.0
    %1481 = vmatpush1.msra.mxu0 0.0
    %1482 = vmatprep.subr.mxu0 0.0
    %1483 = vmatpush1.msra.mxu0 0.0
    %1484 = vmatprep.subr.mxu0 0.0
    %1485 = vmatpush1.msra.mxu0 0.0
    %1486 = vmatprep.subr.mxu0 0.0
    %1487 = vmatpush1.msra.mxu0 0.0
    %1488 = vmatprep.subr.mxu0 0.0
    %1489 = vmatpush1.msra.mxu0 0.0
    %1490 = vmatprep.subr.mxu0 0.0
    %1491 = vmatpush1.msra.mxu0 0.0
    %1492 = vmatprep.subr.mxu0 0.0
    %1493 = vmatpush1.msra.mxu0 0.0
    %1494 = vmatprep.subr.mxu0 0.0
    %1495 = vmatpush1.msra.mxu0 0.0
    %1496 = vmatprep.mubr.f32.mxu0 0.0
    %1497 = vmatmul.mubr.f32.gmra.mrb[0].mxu0 %v1430
    %v1498 = vpop.f32.mrb[0].mxu0
    %v1499 = vadd.f32 %v1426, %v1498
    %v1500 = vpop.f32.mrb[0].mxu0
    %1501 = vdwg.mxu0
    %v1502 = vld [vmem:[%s23] sm:$0xff]
    %v1503 = vld [vmem:[%s23 + $0x8] sm:$0xff]
    %v1504 = vld [vmem:[%s23 + $0x10] sm:$0xff]
    %v1505 = vld [vmem:[%s23 + $0x18] sm:$0xff]
    %1506 = vmatprep.subr.mxu0 0.0
    %1507 = vmatpush1.msra.mxu0 %v1502
    %1508 = vmatprep.subr.mxu0 0.0
    %1509 = vmatpush1.msra.mxu0 %v1503
    %1510 = vmatprep.subr.mxu0 0.0
    %1511 = vmatpush1.msra.mxu0 %v1504
    %1512 = vmatprep.subr.mxu0 0.0
    %1513 = vmatpush1.msra.mxu0 %v1505
    %1514 = vmatprep.subr.mxu0 0.0
    %1515 = vmatpush1.msra.mxu0 0.0
    %1516 = vmatprep.subr.mxu0 0.0
    %1517 = vmatpush1.msra.mxu0 0.0
    %1518 = vmatprep.subr.mxu0 0.0
    %1519 = vmatpush1.msra.mxu0 0.0
    %1520 = vmatprep.subr.mxu0 0.0
    %1521 = vmatpush1.msra.mxu0 0.0
    %1522 = vmatprep.subr.mxu0 0.0
    %1523 = vmatpush1.msra.mxu0 0.0
    %1524 = vmatprep.subr.mxu0 0.0
    %1525 = vmatpush1.msra.mxu0 0.0
    %1526 = vmatprep.subr.mxu0 0.0
    %1527 = vmatpush1.msra.mxu0 0.0
    %1528 = vmatprep.subr.mxu0 0.0
    %1529 = vmatpush1.msra.mxu0 0.0
    %1530 = vmatprep.subr.mxu0 0.0
    %1531 = vmatpush1.msra.mxu0 0.0
    %1532 = vmatprep.subr.mxu0 0.0
    %1533 = vmatpush1.msra.mxu0 0.0
    %1534 = vmatprep.subr.mxu0 0.0
    %1535 = vmatpush1.msra.mxu0 0.0
    %1536 = vmatprep.subr.mxu0 0.0
    %1537 = vmatpush1.msra.mxu0 0.0
    %1538 = vmatprep.subr.mxu0 0.0
    %1539 = vmatpush1.msra.mxu0 0.0
    %1540 = vmatprep.subr.mxu0 0.0
    %1541 = vmatpush1.msra.mxu0 0.0
    %1542 = vmatprep.subr.mxu0 0.0
    %1543 = vmatpush1.msra.mxu0 0.0
    %1544 = vmatprep.subr.mxu0 0.0
    %1545 = vmatpush1.msra.mxu0 0.0
    %1546 = vmatprep.subr.mxu0 0.0
    %1547 = vmatpush1.msra.mxu0 0.0
    %1548 = vmatprep.subr.mxu0 0.0
    %1549 = vmatpush1.msra.mxu0 0.0
    %1550 = vmatprep.subr.mxu0 0.0
    %1551 = vmatpush1.msra.mxu0 0.0
    %1552 = vmatprep.subr.mxu0 0.0
    %1553 = vmatpush1.msra.mxu0 0.0
    %1554 = vmatprep.subr.mxu0 0.0
    %1555 = vmatpush1.msra.mxu0 0.0
    %1556 = vmatprep.subr.mxu0 0.0
    %1557 = vmatpush1.msra.mxu0 0.0
    %1558 = vmatprep.subr.mxu0 0.0
    %1559 = vmatpush1.msra.mxu0 0.0
    %1560 = vmatprep.subr.mxu0 0.0
    %1561 = vmatpush1.msra.mxu0 0.0
    %1562 = vmatprep.subr.mxu0 0.0
    %1563 = vmatpush1.msra.mxu0 0.0
    %1564 = vmatprep.subr.mxu0 0.0
    %1565 = vmatpush1.msra.mxu0 0.0
    %1566 = vmatprep.subr.mxu0 0.0
    %1567 = vmatpush1.msra.mxu0 0.0
    %1568 = vmatprep.subr.mxu0 0.0
    %1569 = vmatpush1.msra.mxu0 0.0
    %1570 = vmatprep.mubr.f32.mxu0 0.0
    %1571 = vmatmul.mubr.f32.gmra.mrb[0].mxu0 %v697
    %v1572 = vpop.f32.mrb[0].mxu0
    %v1573 = vadd.f32 0.0, %v1572
    %v1574 = vpop.f32.mrb[0].mxu0
    %1575 = vdwg.mxu0
    %v1576 = vadd.f32 %v1499, %v1573
    %v1577 = vld [vmem:[%s24] sm:$0x1]
    %v1579 = vlaneseq
    %v1580 = vshrl.u32 %v1579, 7
    %v1581 = vsub.s32 0, %v1580
    %v1582 = vrot.slane %v1577, %v1581
    %v1584 = vadd.f32 %v1576, %v1582
    %vm1585 = vcmask 402432
    %1586 = vst.msk [vmem:[#allocation2] sm:$0x3] %vm1585, %v1584
    %vm1587 = vcmask 254976
    %1588 = vst.msk [vmem:[#allocation4] sm:$0x3] %vm1587, %v1346
    // Predicated region
    $region102: #{decoder_pallas.1} parent=1 // pred_check
      _
    $region103: #{decoder_pallas.1} parent=1 // pred_check_branch
      %1590 = sbr.rel (0) target = $region105
    $region104: #{decoder_pallas.1} parent=1 // pred_region
      %s1592 = ssub.s32 32, 32
      %1593 = vsyncadd [#allocation3], %s1592
      %s1595 = sshll.u32 [#allocation2], 4
      %s1596 = int_to_ptr.vmem [resolvable:$true] %s1595
      %1598 = dma.vmem_to_hbm [thread:$0]  %s1596, 32, %s25, [#allocation3]
    $region105: #{decoder_pallas.1} parent=1 // pred_fallthru
      _
    // Predicated region
    $region106: #{decoder_pallas.1} parent=1 // pred_check
      _
    $region107: #{decoder_pallas.1} parent=1 // pred_check_branch
      %1600 = sbr.rel (0) target = $region109
    $region108: #{decoder_pallas.1} parent=1 // pred_region
      %s1602 = ssub.s32 32, 32
      %1603 = vsyncadd [#allocation5], %s1602
      %s1605 = sshll.u32 [#allocation4], 4
      %s1606 = int_to_ptr.vmem [resolvable:$true] %s1605
      %1608 = dma.vmem_to_hbm [thread:$0]  %s1606, 32, %s26, [#allocation5]
    $region109: #{decoder_pallas.1} parent=1 // pred_fallthru
      _
    // Predicated region
    $region110: #{decoder_pallas.1} parent=1 // pred_check
      _
    $region111: #{decoder_pallas.1} parent=1 // pred_check_branch
      %1610 = sbr.rel (0) target = $region113
    $region112: #{decoder_pallas.1} parent=1 // pred_region
      %1611 = dma.done [#allocation3], 32
    $region113: #{decoder_pallas.1} parent=1 // pred_fallthru
      _
    // Predicated region
    $region114: #{decoder_pallas.1} parent=1 // pred_check
      _
    $region115: #{decoder_pallas.1} parent=1 // pred_check_branch
      %1613 = sbr.rel (0) target = $region117
    $region116: #{decoder_pallas.1} parent=1 // pred_region
      %1614 = dma.done [#allocation5], 32
    $region117: #{decoder_pallas.1} parent=1 // pred_fallthru
      _
    %1615 = vsyncpa [#allocation3], 1
    %1616 = vsyncpa [#allocation5], 1

</llo_original>
